<compile_context>
chip_gen: v5e
topology: v5e:2x2
jax: 0.10.0
libtpu: 0.0.40
codegen_flags: <defaults>
</compile_context>

<pallas_src>
import jax
import jax.numpy as jnp
from jax import lax
from jax.experimental import pallas as pl
from jax.experimental.pallas import tpu as pltpu


# ----------------------------------------------------------------------------
# Fused 4-layer conv+ReLU kernel (one batch sample per grid step).
# ----------------------------------------------------------------------------
def _build_encoder_kernel(dims):
    (BW, OH1, OW1, OH2, OW2, WV2, OH3, OW3, OH4, OW4) = dims

    def kernel(y_ref, w1_ref, b1_ref, w2_ref, b2_ref, w3_ref, b3_ref,
               w4_ref, b4_ref, o_ref, h1_ref, h2_ref, h3_ref):
        f32 = jnp.float32
        c1o = w1_ref.shape[-1]   # 32
        c2o = w2_ref.shape[-1]   # 64
        c3o = w3_ref.shape[-1]   # 64
        c4o = w4_ref.shape[-1]   # 16
        b1, b2, b3, b4 = b1_ref[...], b2_ref[...], b3_ref[...], b4_ref[...]

        # conv1 --- after the 4x4 space-to-depth, this is a k=2, s=1 conv with
        # 64 packed input channels over a (BH, BW) grid; y is flat (BH*BW, 64).
        def c1_row(oh, carry):
            acc = jnp.zeros((OW1, c1o), f32)
            for dh in range(2):
                for dw in range(2):
                    rows = y_ref[pl.ds((oh + dh) * BW + dw, OW1), :]
                    acc = acc + jnp.dot(rows, w1_ref[dh * 2 + dw],
                                        preferred_element_type=f32)
            h1_ref[pl.ds(oh * OW1, OW1), :] = jnp.maximum(acc + b1, 0.0)
            return carry

        lax.fori_loop(0, OH1, c1_row, 0)

        # conv2 --- k=4, s=2.  Accumulate the stride-1 result for one output
        # row (WV2 positions, contiguous reads only), then keep every 2nd
        # position via a constant 0/1 selection matmul (no strided accesses).
        sel = (lax.broadcasted_iota(jnp.int32, (OW2, WV2), 1) ==
               2 * lax.broadcasted_iota(jnp.int32, (OW2, WV2), 0)).astype(f32)

        def c2_row(oh, carry):
            accf = jnp.zeros((WV2, c2o), f32)
            for kh in range(4):
                for kw in range(4):
                    rows = h1_ref[pl.ds((2 * oh + kh) * OW1 + kw, WV2), :]
                    accf = accf + jnp.dot(rows, w2_ref[kh * 4 + kw],
                                          preferred_element_type=f32)
            acc = jnp.dot(sel, accf, preferred_element_type=f32)
            h2_ref[pl.ds(oh * OW2, OW2), :] = jnp.maximum(acc + b2, 0.0)
            return carry

        lax.fori_loop(0, OH2, c2_row, 0)

        # conv3 --- k=3, s=1.
        def c3_row(oh, carry):
            acc = jnp.zeros((OW3, c3o), f32)
            for kh in range(3):
                for kw in range(3):
                    rows = h2_ref[pl.ds((oh + kh) * OW2 + kw, OW3), :]
                    acc = acc + jnp.dot(rows, w3_ref[kh * 3 + kw],
                                        preferred_element_type=f32)
            h3_ref[pl.ds(oh * OW3, OW3), :] = jnp.maximum(acc + b3, 0.0)
            return carry

        lax.fori_loop(0, OH3, c3_row, 0)

        # conv4 --- k=3, s=1; writes straight to the kernel output block
        # (exactly 16 lanes wide, no padded writeback).
        def c4_row(oh, carry):
            acc = jnp.zeros((OW4, c4o), f32)
            for kh in range(3):
                for kw in range(3):
                    rows = h3_ref[pl.ds((oh + kh) * OW3 + kw, OW4), :]
                    acc = acc + jnp.dot(rows, w4_ref[kh * 3 + kw],
                                        preferred_element_type=f32)
            o_ref[pl.ds(oh * OW4, OW4), :] = jnp.maximum(acc + b4, 0.0)
            return carry

        lax.fori_loop(0, OH4, c4_row, 0)

    return kernel


# ----------------------------------------------------------------------------
# One-time parameter repack (PyTorch OIHW -> per-tap channel-last matrices).
# ----------------------------------------------------------------------------
def prepare_encoder_params(params):
    w1 = params["w1"]                              # (32, 4, 8, 8)  (O, C, KH, KW)
    o1, c1 = w1.shape[0], w1.shape[1]
    # Factor the 8x8/stride-4 kernel as a 2x2/stride-1 kernel over a 4x4
    # space-to-depth'd input: tap (dh, dw), packed channel index (dh2, dw2, c).
    w1 = w1.reshape(o1, c1, 2, 4, 2, 4)            # (O, C, dh, dh2, dw, dw2)
    w1 = jnp.transpose(w1, (2, 4, 3, 5, 1, 0))     # (dh, dw, dh2, dw2, C, O)
    w1 = w1.reshape(4, 16 * c1, o1)                # (4 taps, 64, 32)

    def taps(w):                                   # (O, C, KH, KW) -> (KH*KW, C, O)
        o, c, kh, kw = w.shape
        return jnp.transpose(w, (2, 3, 1, 0)).reshape(kh * kw, c, o)

    return {
        "w1": w1,                 "b1": params["b1"].reshape(1, -1),
        "w2": taps(params["w2"]), "b2": params["b2"].reshape(1, -1),
        "w3": taps(params["w3"]), "b3": params["b3"].reshape(1, -1),
        "w4": taps(params["w4"]), "b4": params["b4"].reshape(1, -1),
    }


# ----------------------------------------------------------------------------
# Forward pass: one entry layout op, one fused pallas_call, one exit transpose.
# ----------------------------------------------------------------------------
@jax.jit
def encoder_forward(x, prep):
    """x: (N, 4, H, W) NCHW float32 -> (N, 16, OH4, OW4) NCHW float32."""
    N, C, H, W = x.shape
    assert C == 4 and H % 4 == 0 and W % 4 == 0, (C, H, W)
    BH, BW = H // 4, W // 4
    OH1, OW1 = BH - 1, BW - 1                             # conv1: k=8, s=4
    OH2, OW2 = (OH1 - 4) // 2 + 1, (OW1 - 4) // 2 + 1     # conv2: k=4, s=2
    WV2 = OW1 - 3                                         # stride-1 conv2 row width
    OH3, OW3 = OH2 - 2, OW2 - 2                           # conv3: k=3, s=1
    OH4, OW4 = OH3 - 2, OW3 - 2                           # conv4: k=3, s=1
    assert OH4 >= 1 and OW4 >= 1, "input spatial size too small for the encoder"

    c1o = prep["w1"].shape[-1]
    c2o = prep["w2"].shape[-1]
    c3o = prep["w3"].shape[-1]
    c4o = prep["w4"].shape[-1]

    # Entry layout op: NCHW -> channel-last + 4x4 space-to-depth, flattened to
    # (N, BH*BW, 64) rows.  Pure permutation — no im2col data replication.
    y = jnp.transpose(x, (0, 2, 3, 1))                    # (N, H, W, C)
    y = y.reshape(N, BH, 4, BW, 4, C)
    y = jnp.transpose(y, (0, 1, 3, 2, 4, 5))              # (N, BH, BW, 4, 4, C)
    y = y.reshape(N, BH * BW, 16 * C)

    kernel = _build_encoder_kernel(
        (BW, OH1, OW1, OH2, OW2, WV2, OH3, OW3, OH4, OW4))

    def whole(a):
        return pl.BlockSpec(a.shape, lambda n: (0,) * a.ndim)

    out_flat = pl.pallas_call(
        kernel,
        out_shape=jax.ShapeDtypeStruct((N, OH4 * OW4, c4o), jnp.float32),
        grid=(N,),
        in_specs=[
            pl.BlockSpec((None, BH * BW, 16 * C), lambda n: (n, 0, 0)),
            whole(prep["w1"]), whole(prep["b1"]),
            whole(prep["w2"]), whole(prep["b2"]),
            whole(prep["w3"]), whole(prep["b3"]),
            whole(prep["w4"]), whole(prep["b4"]),
        ],
        out_specs=pl.BlockSpec((None, OH4 * OW4, c4o), lambda n: (n, 0, 0)),
        scratch_shapes=[
            pltpu.VMEM((OH1 * OW1, c1o), jnp.float32),    # conv1 activations
            pltpu.VMEM((OH2 * OW2, c2o), jnp.float32),    # conv2 activations
            pltpu.VMEM((OH3 * OW3, c3o), jnp.float32),    # conv3 activations
        ],
        compiler_params=pltpu.CompilerParams(
            dimension_semantics=("parallel",)),
    )(y, prep["w1"], prep["b1"], prep["w2"], prep["b2"],
      prep["w3"], prep["b3"], prep["w4"], prep["b4"])

    # Exit layout op back to PyTorch's NCHW (tiny: N x 16 x OH4 x OW4).
    return jnp.transpose(out_flat.reshape(N, OH4, OW4, c4o), (0, 3, 1, 2))


# ----------------------------------------------------------------------------
# Deterministic parameter init (shapes from the module's __init__).
# ----------------------------------------------------------------------------
def init_params(key):
    shapes = {
        "w1": (32, 4, 8, 8), "b1": (32,),
        "w2": (64, 32, 4, 4), "b2": (64,),
        "w3": (64, 64, 3, 3), "b3": (64,),
        "w4": (16, 64, 3, 3), "b4": (16,),
    }
    params = {}
    for name, shape in shapes.items():
        key, sub = jax.random.split(key)
        fan_in = 1
        for d in shape[1:]:
            fan_in *= d
        scale = 1.0 / jnp.sqrt(jnp.float32(max(fan_in, 1)))
        params[name] = scale * jax.random.normal(sub, shape, dtype=jnp.float32)
    return params


def _reference_forward(x, params):
    """Pure-JAX reference (lax conv) for a correctness sanity check."""
    def conv(x, w, b, s):
        y = jax.lax.conv_general_dilated(
            x, w, window_strides=(s, s), padding="VALID",
            dimension_numbers=("NCHW", "OIHW", "NCHW"))
        return jax.nn.relu(y + b[None, :, None, None])
    out = conv(x, params["w1"], params["b1"], 4)
    out = conv(out, params["w2"], params["b2"], 2)
    out = conv(out, params["w3"], params["b3"], 1)
    out = conv(out, params["w4"], params["b4"], 1)
    return out


if __name__ == "__main__":
    key = jax.random.PRNGKey(0)
    key, pkey, xkey = jax.random.split(key, 3)
    params = init_params(pkey)
    prep = prepare_encoder_params(params)

    # Small input consistent with the module: batch=2, 4 channels, 64x64 frame
    # (64 is the smallest "nice" spatial size the 4-conv stack accepts).
    x = jax.random.uniform(xkey, (2, 4, 64, 64), dtype=jnp.float32)

    out = jax.block_until_ready(encoder_forward(x, prep))
    ref = jax.block_until_ready(_reference_forward(x, params))
    assert out.shape == ref.shape, (out.shape, ref.shape)
    assert jnp.allclose(out, ref, atol=1e-4, rtol=1e-4), (
        "mismatch vs reference, max abs err = %e"
        % float(jnp.max(jnp.abs(out - ref))))

    print("KERNEL_OK")
</pallas_src>

<mosaic_0001>
module attributes {stable_mosaic.version = 11 : i64} {
  func.func @kernel(%arg0: i32, %arg1: memref<1x256x64xf32, #tpu.memory_space<vmem>>, %arg2: memref<4x64x32xf32, #tpu.memory_space<vmem>>, %arg3: memref<1x32xf32, #tpu.memory_space<vmem>>, %arg4: memref<16x32x64xf32, #tpu.memory_space<vmem>>, %arg5: memref<1x64xf32, #tpu.memory_space<vmem>>, %arg6: memref<9x64x64xf32, #tpu.memory_space<vmem>>, %arg7: memref<1x64xf32, #tpu.memory_space<vmem>>, %arg8: memref<9x64x16xf32, #tpu.memory_space<vmem>>, %arg9: memref<1x16xf32, #tpu.memory_space<vmem>>, %arg10: memref<1x4x16xf32, #tpu.memory_space<vmem>>, %arg11: memref<225x32xf32, #tpu.memory_space<vmem>>, %arg12: memref<36x64xf32, #tpu.memory_space<vmem>>, %arg13: memref<16x64xf32, #tpu.memory_space<vmem>>) attributes {dimension_semantics = [#tpu.dimension_semantics<parallel>], iteration_bounds = array<i64: 2>, scalar_prefetch = 0 : i64, scratch_operands = 3 : i64, tpu.core_type = #tpu.core_type<tc>, window_params = [{transform_indices = @transform_0, window_bounds = array<i64: 1, 256, 64>}, {pipeline_mode = #tpu.pipeline_mode<synchronous>, transform_indices = @transform_1, window_bounds = array<i64: 4, 64, 32>}, {pipeline_mode = #tpu.pipeline_mode<synchronous>, transform_indices = @transform_2, window_bounds = array<i64: 1, 32>}, {pipeline_mode = #tpu.pipeline_mode<synchronous>, transform_indices = @transform_3, window_bounds = array<i64: 16, 32, 64>}, {pipeline_mode = #tpu.pipeline_mode<synchronous>, transform_indices = @transform_4, window_bounds = array<i64: 1, 64>}, {pipeline_mode = #tpu.pipeline_mode<synchronous>, transform_indices = @transform_5, window_bounds = array<i64: 9, 64, 64>}, {pipeline_mode = #tpu.pipeline_mode<synchronous>, transform_indices = @transform_6, window_bounds = array<i64: 1, 64>}, {pipeline_mode = #tpu.pipeline_mode<synchronous>, transform_indices = @transform_7, window_bounds = array<i64: 9, 64, 16>}, {pipeline_mode = #tpu.pipeline_mode<synchronous>, transform_indices = @transform_8, window_bounds = array<i64: 1, 16>}, {transform_indices = @transform_9, window_bounds = array<i64: 1, 4, 16>}]} {
    %c0 = arith.constant 0 : index
    %c0_0 = arith.constant 0 : index
    %0 = vector.load %arg3[%c0, %c0_0] : memref<1x32xf32, #tpu.memory_space<vmem>>, vector<1x32xf32>
    %c0_1 = arith.constant 0 : index
    %c0_2 = arith.constant 0 : index
    %1 = vector.load %arg5[%c0_1, %c0_2] : memref<1x64xf32, #tpu.memory_space<vmem>>, vector<1x64xf32>
    %c0_3 = arith.constant 0 : index
    %c0_4 = arith.constant 0 : index
    %2 = vector.load %arg7[%c0_3, %c0_4] : memref<1x64xf32, #tpu.memory_space<vmem>>, vector<1x64xf32>
    %c0_5 = arith.constant 0 : index
    %c0_6 = arith.constant 0 : index
    %3 = vector.load %arg9[%c0_5, %c0_6] : memref<1x16xf32, #tpu.memory_space<vmem>>, vector<1x16xf32>
    %c0_i32 = arith.constant 0 : i32
    %c15_i32 = arith.constant 15 : i32
    %4 = arith.addi %c0_i32, %c15_i32 : i32
    %c1_i32 = arith.constant 1 : i32
    scf.for %arg14 = %c0_i32 to %4 step %c1_i32  : i32 {
      %cst = arith.constant 0.000000e+00 : f32
      %15 = vector.broadcast %cst : f32 to vector<15x32xf32>
      %c0_i32_18 = arith.constant 0 : i32
      %16 = arith.addi %arg14, %c0_i32_18 : i32
      %c16_i32 = arith.constant 16 : i32
      %17 = arith.muli %16, %c16_i32 : i32
      %c0_i32_19 = arith.constant 0 : i32
      %18 = arith.addi %17, %c0_i32_19 : i32
      %c0_20 = arith.constant 0 : index
      %19 = arith.index_cast %18 : i32 to index
      %c0_21 = arith.constant 0 : index
      %20 = vector.load %arg1[%c0_20, %19, %c0_21] : memref<1x256x64xf32, #tpu.memory_space<vmem>>, vector<1x15x64xf32>
      %21 = vector.shape_cast %20 : vector<1x15x64xf32> to vector<15x64xf32>
      %c0_22 = arith.constant 0 : index
      %c0_23 = arith.constant 0 : index
      %c0_24 = arith.constant 0 : index
      %22 = vector.load %arg2[%c0_22, %c0_23, %c0_24] : memref<4x64x32xf32, #tpu.memory_space<vmem>>, vector<1x64x32xf32>
      %23 = vector.shape_cast %22 : vector<1x64x32xf32> to vector<64x32xf32>
      %cst_25 = arith.constant dense<0.000000e+00> : vector<15x32xf32>
      %24 = tpu.matmul %21, %23, %cst_25 {dimension_numbers = #tpu.dot_dimension_numbers<[1], [0], [0], [1], [0, 0, 1, 1], [], []>} : vector<15x64xf32>, vector<64x32xf32>, vector<15x32xf32> -> vector<15x32xf32>
      %25 = arith.addf %15, %24 : vector<15x32xf32>
      %c0_i32_26 = arith.constant 0 : i32
      %26 = arith.addi %arg14, %c0_i32_26 : i32
      %c16_i32_27 = arith.constant 16 : i32
      %27 = arith.muli %26, %c16_i32_27 : i32
      %c1_i32_28 = arith.constant 1 : i32
      %28 = arith.addi %27, %c1_i32_28 : i32
      %c0_29 = arith.constant 0 : index
      %29 = arith.index_cast %28 : i32 to index
      %c0_30 = arith.constant 0 : index
      %30 = vector.load %arg1[%c0_29, %29, %c0_30] : memref<1x256x64xf32, #tpu.memory_space<vmem>>, vector<1x15x64xf32>
      %31 = vector.shape_cast %30 : vector<1x15x64xf32> to vector<15x64xf32>
      %c1 = arith.constant 1 : index
      %c0_31 = arith.constant 0 : index
      %c0_32 = arith.constant 0 : index
      %32 = vector.load %arg2[%c1, %c0_31, %c0_32] : memref<4x64x32xf32, #tpu.memory_space<vmem>>, vector<1x64x32xf32>
      %33 = vector.shape_cast %32 : vector<1x64x32xf32> to vector<64x32xf32>
      %cst_33 = arith.constant dense<0.000000e+00> : vector<15x32xf32>
      %34 = tpu.matmul %31, %33, %cst_33 {dimension_numbers = #tpu.dot_dimension_numbers<[1], [0], [0], [1], [0, 0, 1, 1], [], []>} : vector<15x64xf32>, vector<64x32xf32>, vector<15x32xf32> -> vector<15x32xf32>
      %35 = arith.addf %25, %34 : vector<15x32xf32>
      %c1_i32_34 = arith.constant 1 : i32
      %36 = arith.addi %arg14, %c1_i32_34 : i32
      %c16_i32_35 = arith.constant 16 : i32
      %37 = arith.muli %36, %c16_i32_35 : i32
      %c0_i32_36 = arith.constant 0 : i32
      %38 = arith.addi %37, %c0_i32_36 : i32
      %c0_37 = arith.constant 0 : index
      %39 = arith.index_cast %38 : i32 to index
      %c0_38 = arith.constant 0 : index
      %40 = vector.load %arg1[%c0_37, %39, %c0_38] : memref<1x256x64xf32, #tpu.memory_space<vmem>>, vector<1x15x64xf32>
      %41 = vector.shape_cast %40 : vector<1x15x64xf32> to vector<15x64xf32>
      %c2 = arith.constant 2 : index
      %c0_39 = arith.constant 0 : index
      %c0_40 = arith.constant 0 : index
      %42 = vector.load %arg2[%c2, %c0_39, %c0_40] : memref<4x64x32xf32, #tpu.memory_space<vmem>>, vector<1x64x32xf32>
      %43 = vector.shape_cast %42 : vector<1x64x32xf32> to vector<64x32xf32>
      %cst_41 = arith.constant dense<0.000000e+00> : vector<15x32xf32>
      %44 = tpu.matmul %41, %43, %cst_41 {dimension_numbers = #tpu.dot_dimension_numbers<[1], [0], [0], [1], [0, 0, 1, 1], [], []>} : vector<15x64xf32>, vector<64x32xf32>, vector<15x32xf32> -> vector<15x32xf32>
      %45 = arith.addf %35, %44 : vector<15x32xf32>
      %c1_i32_42 = arith.constant 1 : i32
      %46 = arith.addi %arg14, %c1_i32_42 : i32
      %c16_i32_43 = arith.constant 16 : i32
      %47 = arith.muli %46, %c16_i32_43 : i32
      %c1_i32_44 = arith.constant 1 : i32
      %48 = arith.addi %47, %c1_i32_44 : i32
      %c0_45 = arith.constant 0 : index
      %49 = arith.index_cast %48 : i32 to index
      %c0_46 = arith.constant 0 : index
      %50 = vector.load %arg1[%c0_45, %49, %c0_46] : memref<1x256x64xf32, #tpu.memory_space<vmem>>, vector<1x15x64xf32>
      %51 = vector.shape_cast %50 : vector<1x15x64xf32> to vector<15x64xf32>
      %c3 = arith.constant 3 : index
      %c0_47 = arith.constant 0 : index
      %c0_48 = arith.constant 0 : index
      %52 = vector.load %arg2[%c3, %c0_47, %c0_48] : memref<4x64x32xf32, #tpu.memory_space<vmem>>, vector<1x64x32xf32>
      %53 = vector.shape_cast %52 : vector<1x64x32xf32> to vector<64x32xf32>
      %cst_49 = arith.constant dense<0.000000e+00> : vector<15x32xf32>
      %54 = tpu.matmul %51, %53, %cst_49 {dimension_numbers = #tpu.dot_dimension_numbers<[1], [0], [0], [1], [0, 0, 1, 1], [], []>} : vector<15x64xf32>, vector<64x32xf32>, vector<15x32xf32> -> vector<15x32xf32>
      %55 = arith.addf %45, %54 : vector<15x32xf32>
      %56 = vector.broadcast %0 : vector<1x32xf32> to vector<15x32xf32>
      %57 = arith.addf %55, %56 : vector<15x32xf32>
      %cst_50 = arith.constant 0.000000e+00 : f32
      %58 = vector.broadcast %cst_50 : f32 to vector<15x32xf32>
      %59 = arith.maximumf %57, %58 : vector<15x32xf32>
      %c15_i32_51 = arith.constant 15 : i32
      %60 = arith.muli %arg14, %c15_i32_51 : i32
      %61 = arith.index_cast %60 : i32 to index
      %c0_52 = arith.constant 0 : index
      %62 = vector.load %arg11[%61, %c0_52] : memref<225x32xf32, #tpu.memory_space<vmem>>, vector<15x32xf32>
      tpu.vector_store %arg11[%61, %c0_52], %59 {strides = array<i32>} : memref<225x32xf32, #tpu.memory_space<vmem>>, vector<15x32xf32>,
    }
    %c15_i32_7 = arith.constant 15 : i32
    %5 = tpu.iota {dimensions = array<i32: 1>} : vector<6x12xi32>
    %6 = tpu.iota {dimensions = array<i32: 0>} : vector<6x12xi32>
    %c2_i32 = arith.constant 2 : i32
    %7 = vector.broadcast %c2_i32 : i32 to vector<6x12xi32>
    %8 = arith.muli %7, %6 : vector<6x12xi32>
    %9 = arith.cmpi eq, %5, %8 : vector<6x12xi32>
    %10 = arith.extui %9 : vector<6x12xi1> to vector<6x12xi32>
    %11 = arith.sitofp %10 : vector<6x12xi32> to vector<6x12xf32>
    %c0_i32_8 = arith.constant 0 : i32
    %c6_i32 = arith.constant 6 : i32
    %12 = arith.addi %c0_i32_8, %c6_i32 : i32
    %c1_i32_9 = arith.constant 1 : i32
    scf.for %arg14 = %c0_i32_8 to %12 step %c1_i32_9  : i32 {
      %cst = arith.constant 0.000000e+00 : f32
      %15 = vector.broadcast %cst : f32 to vector<12x64xf32>
      %c2_i32_18 = arith.constant 2 : i32
      %16 = arith.muli %c2_i32_18, %arg14 : i32
      %c0_i32_19 = arith.constant 0 : i32
      %17 = arith.addi %16, %c0_i32_19 : i32
      %c15_i32_20 = arith.constant 15 : i32
      %18 = arith.muli %17, %c15_i32_20 : i32
      %c0_i32_21 = arith.constant 0 : i32
      %19 = arith.addi %18, %c0_i32_21 : i32
      %20 = arith.index_cast %19 : i32 to index
      %c0_22 = arith.constant 0 : index
      %21 = vector.load %arg11[%20, %c0_22] : memref<225x32xf32, #tpu.memory_space<vmem>>, vector<12x32xf32>
      %c0_23 = arith.constant 0 : index
      %c0_24 = arith.constant 0 : index
      %c0_25 = arith.constant 0 : index
      %22 = vector.load %arg4[%c0_23, %c0_24, %c0_25] : memref<16x32x64xf32, #tpu.memory_space<vmem>>, vector<1x32x64xf32>
      %23 = vector.shape_cast %22 : vector<1x32x64xf32> to vector<32x64xf32>
      %cst_26 = arith.constant dense<0.000000e+00> : vector<12x64xf32>
      %24 = tpu.matmul %21, %23, %cst_26 {dimension_numbers = #tpu.dot_dimension_numbers<[1], [0], [0], [1], [0, 0, 1, 1], [], []>} : vector<12x32xf32>, vector<32x64xf32>, vector<12x64xf32> -> vector<12x64xf32>
      %25 = arith.addf %15, %24 : vector<12x64xf32>
      %c2_i32_27 = arith.constant 2 : i32
      %26 = arith.muli %c2_i32_27, %arg14 : i32
      %c0_i32_28 = arith.constant 0 : i32
      %27 = arith.addi %26, %c0_i32_28 : i32
      %c15_i32_29 = arith.constant 15 : i32
      %28 = arith.muli %27, %c15_i32_29 : i32
      %c1_i32_30 = arith.constant 1 : i32
      %29 = arith.addi %28, %c1_i32_30 : i32
      %30 = arith.index_cast %29 : i32 to index
      %c0_31 = arith.constant 0 : index
      %31 = vector.load %arg11[%30, %c0_31] : memref<225x32xf32, #tpu.memory_space<vmem>>, vector<12x32xf32>
      %c1 = arith.constant 1 : index
      %c0_32 = arith.constant 0 : index
      %c0_33 = arith.constant 0 : index
      %32 = vector.load %arg4[%c1, %c0_32, %c0_33] : memref<16x32x64xf32, #tpu.memory_space<vmem>>, vector<1x32x64xf32>
      %33 = vector.shape_cast %32 : vector<1x32x64xf32> to vector<32x64xf32>
      %cst_34 = arith.constant dense<0.000000e+00> : vector<12x64xf32>
      %34 = tpu.matmul %31, %33, %cst_34 {dimension_numbers = #tpu.dot_dimension_numbers<[1], [0], [0], [1], [0, 0, 1, 1], [], []>} : vector<12x32xf32>, vector<32x64xf32>, vector<12x64xf32> -> vector<12x64xf32>
      %35 = arith.addf %25, %34 : vector<12x64xf32>
      %c2_i32_35 = arith.constant 2 : i32
      %36 = arith.muli %c2_i32_35, %arg14 : i32
      %c0_i32_36 = arith.constant 0 : i32
      %37 = arith.addi %36, %c0_i32_36 : i32
      %c15_i32_37 = arith.constant 15 : i32
      %38 = arith.muli %37, %c15_i32_37 : i32
      %c2_i32_38 = arith.constant 2 : i32
      %39 = arith.addi %38, %c2_i32_38 : i32
      %40 = arith.index_cast %39 : i32 to index
      %c0_39 = arith.constant 0 : index
      %41 = vector.load %arg11[%40, %c0_39] : memref<225x32xf32, #tpu.memory_space<vmem>>, vector<12x32xf32>
      %c2 = arith.constant 2 : index
      %c0_40 = arith.constant 0 : index
      %c0_41 = arith.constant 0 : index
      %42 = vector.load %arg4[%c2, %c0_40, %c0_41] : memref<16x32x64xf32, #tpu.memory_space<vmem>>, vector<1x32x64xf32>
      %43 = vector.shape_cast %42 : vector<1x32x64xf32> to vector<32x64xf32>
      %cst_42 = arith.constant dense<0.000000e+00> : vector<12x64xf32>
      %44 = tpu.matmul %41, %43, %cst_42 {dimension_numbers = #tpu.dot_dimension_numbers<[1], [0], [0], [1], [0, 0, 1, 1], [], []>} : vector<12x32xf32>, vector<32x64xf32>, vector<12x64xf32> -> vector<12x64xf32>
      %45 = arith.addf %35, %44 : vector<12x64xf32>
      %c2_i32_43 = arith.constant 2 : i32
      %46 = arith.muli %c2_i32_43, %arg14 : i32
      %c0_i32_44 = arith.constant 0 : i32
      %47 = arith.addi %46, %c0_i32_44 : i32
      %c15_i32_45 = arith.constant 15 : i32
      %48 = arith.muli %47, %c15_i32_45 : i32
      %c3_i32 = arith.constant 3 : i32
      %49 = arith.addi %48, %c3_i32 : i32
      %50 = arith.index_cast %49 : i32 to index
      %c0_46 = arith.constant 0 : index
      %51 = vector.load %arg11[%50, %c0_46] : memref<225x32xf32, #tpu.memory_space<vmem>>, vector<12x32xf32>
      %c3 = arith.constant 3 : index
      %c0_47 = arith.constant 0 : index
      %c0_48 = arith.constant 0 : index
      %52 = vector.load %arg4[%c3, %c0_47, %c0_48] : memref<16x32x64xf32, #tpu.memory_space<vmem>>, vector<1x32x64xf32>
      %53 = vector.shape_cast %52 : vector<1x32x64xf32> to vector<32x64xf32>
      %cst_49 = arith.constant dense<0.000000e+00> : vector<12x64xf32>
      %54 = tpu.matmul %51, %53, %cst_49 {dimension_numbers = #tpu.dot_dimension_numbers<[1], [0], [0], [1], [0, 0, 1, 1], [], []>} : vector<12x32xf32>, vector<32x64xf32>, vector<12x64xf32> -> vector<12x64xf32>
      %55 = arith.addf %45, %54 : vector<12x64xf32>
      %c2_i32_50 = arith.constant 2 : i32
      %56 = arith.muli %c2_i32_50, %arg14 : i32
      %c1_i32_51 = arith.constant 1 : i32
      %57 = arith.addi %56, %c1_i32_51 : i32
      %c15_i32_52 = arith.constant 15 : i32
      %58 = arith.muli %57, %c15_i32_52 : i32
      %c0_i32_53 = arith.constant 0 : i32
      %59 = arith.addi %58, %c0_i32_53 : i32
      %60 = arith.index_cast %59 : i32 to index
      %c0_54 = arith.constant 0 : index
      %61 = vector.load %arg11[%60, %c0_54] : memref<225x32xf32, #tpu.memory_space<vmem>>, vector<12x32xf32>
      %c4 = arith.constant 4 : index
      %c0_55 = arith.constant 0 : index
      %c0_56 = arith.constant 0 : index
      %62 = vector.load %arg4[%c4, %c0_55, %c0_56] : memref<16x32x64xf32, #tpu.memory_space<vmem>>, vector<1x32x64xf32>
      %63 = vector.shape_cast %62 : vector<1x32x64xf32> to vector<32x64xf32>
      %cst_57 = arith.constant dense<0.000000e+00> : vector<12x64xf32>
      %64 = tpu.matmul %61, %63, %cst_57 {dimension_numbers = #tpu.dot_dimension_numbers<[1], [0], [0], [1], [0, 0, 1, 1], [], []>} : vector<12x32xf32>, vector<32x64xf32>, vector<12x64xf32> -> vector<12x64xf32>
      %65 = arith.addf %55, %64 : vector<12x64xf32>
      %c2_i32_58 = arith.constant 2 : i32
      %66 = arith.muli %c2_i32_58, %arg14 : i32
      %c1_i32_59 = arith.constant 1 : i32
      %67 = arith.addi %66, %c1_i32_59 : i32
      %c15_i32_60 = arith.constant 15 : i32
      %68 = arith.muli %67, %c15_i32_60 : i32
      %c1_i32_61 = arith.constant 1 : i32
      %69 = arith.addi %68, %c1_i32_61 : i32
      %70 = arith.index_cast %69 : i32 to index
      %c0_62 = arith.constant 0 : index
      %71 = vector.load %arg11[%70, %c0_62] : memref<225x32xf32, #tpu.memory_space<vmem>>, vector<12x32xf32>
      %c5 = arith.constant 5 : index
      %c0_63 = arith.constant 0 : index
      %c0_64 = arith.constant 0 : index
      %72 = vector.load %arg4[%c5, %c0_63, %c0_64] : memref<16x32x64xf32, #tpu.memory_space<vmem>>, vector<1x32x64xf32>
      %73 = vector.shape_cast %72 : vector<1x32x64xf32> to vector<32x64xf32>
      %cst_65 = arith.constant dense<0.000000e+00> : vector<12x64xf32>
      %74 = tpu.matmul %71, %73, %cst_65 {dimension_numbers = #tpu.dot_dimension_numbers<[1], [0], [0], [1], [0, 0, 1, 1], [], []>} : vector<12x32xf32>, vector<32x64xf32>, vector<12x64xf32> -> vector<12x64xf32>
      %75 = arith.addf %65, %74 : vector<12x64xf32>
      %c2_i32_66 = arith.constant 2 : i32
      %76 = arith.muli %c2_i32_66, %arg14 : i32
      %c1_i32_67 = arith.constant 1 : i32
      %77 = arith.addi %76, %c1_i32_67 : i32
      %c15_i32_68 = arith.constant 15 : i32
      %78 = arith.muli %77, %c15_i32_68 : i32
      %c2_i32_69 = arith.constant 2 : i32
      %79 = arith.addi %78, %c2_i32_69 : i32
      %80 = arith.index_cast %79 : i32 to index
      %c0_70 = arith.constant 0 : index
      %81 = vector.load %arg11[%80, %c0_70] : memref<225x32xf32, #tpu.memory_space<vmem>>, vector<12x32xf32>
      %c6 = arith.constant 6 : index
      %c0_71 = arith.constant 0 : index
      %c0_72 = arith.constant 0 : index
      %82 = vector.load %arg4[%c6, %c0_71, %c0_72] : memref<16x32x64xf32, #tpu.memory_space<vmem>>, vector<1x32x64xf32>
      %83 = vector.shape_cast %82 : vector<1x32x64xf32> to vector<32x64xf32>
      %cst_73 = arith.constant dense<0.000000e+00> : vector<12x64xf32>
      %84 = tpu.matmul %81, %83, %cst_73 {dimension_numbers = #tpu.dot_dimension_numbers<[1], [0], [0], [1], [0, 0, 1, 1], [], []>} : vector<12x32xf32>, vector<32x64xf32>, vector<12x64xf32> -> vector<12x64xf32>
      %85 = arith.addf %75, %84 : vector<12x64xf32>
      %c2_i32_74 = arith.constant 2 : i32
      %86 = arith.muli %c2_i32_74, %arg14 : i32
      %c1_i32_75 = arith.constant 1 : i32
      %87 = arith.addi %86, %c1_i32_75 : i32
      %c15_i32_76 = arith.constant 15 : i32
      %88 = arith.muli %87, %c15_i32_76 : i32
      %c3_i32_77 = arith.constant 3 : i32
      %89 = arith.addi %88, %c3_i32_77 : i32
      %90 = arith.index_cast %89 : i32 to index
      %c0_78 = arith.constant 0 : index
      %91 = vector.load %arg11[%90, %c0_78] : memref<225x32xf32, #tpu.memory_space<vmem>>, vector<12x32xf32>
      %c7 = arith.constant 7 : index
      %c0_79 = arith.constant 0 : index
      %c0_80 = arith.constant 0 : index
      %92 = vector.load %arg4[%c7, %c0_79, %c0_80] : memref<16x32x64xf32, #tpu.memory_space<vmem>>, vector<1x32x64xf32>
      %93 = vector.shape_cast %92 : vector<1x32x64xf32> to vector<32x64xf32>
      %cst_81 = arith.constant dense<0.000000e+00> : vector<12x64xf32>
      %94 = tpu.matmul %91, %93, %cst_81 {dimension_numbers = #tpu.dot_dimension_numbers<[1], [0], [0], [1], [0, 0, 1, 1], [], []>} : vector<12x32xf32>, vector<32x64xf32>, vector<12x64xf32> -> vector<12x64xf32>
      %95 = arith.addf %85, %94 : vector<12x64xf32>
      %c2_i32_82 = arith.constant 2 : i32
      %96 = arith.muli %c2_i32_82, %arg14 : i32
      %c2_i32_83 = arith.constant 2 : i32
      %97 = arith.addi %96, %c2_i32_83 : i32
      %c15_i32_84 = arith.constant 15 : i32
      %98 = arith.muli %97, %c15_i32_84 : i32
      %c0_i32_85 = arith.constant 0 : i32
      %99 = arith.addi %98, %c0_i32_85 : i32
      %100 = arith.index_cast %99 : i32 to index
      %c0_86 = arith.constant 0 : index
      %101 = vector.load %arg11[%100, %c0_86] : memref<225x32xf32, #tpu.memory_space<vmem>>, vector<12x32xf32>
      %c8 = arith.constant 8 : index
      %c0_87 = arith.constant 0 : index
      %c0_88 = arith.constant 0 : index
      %102 = vector.load %arg4[%c8, %c0_87, %c0_88] : memref<16x32x64xf32, #tpu.memory_space<vmem>>, vector<1x32x64xf32>
      %103 = vector.shape_cast %102 : vector<1x32x64xf32> to vector<32x64xf32>
      %cst_89 = arith.constant dense<0.000000e+00> : vector<12x64xf32>
      %104 = tpu.matmul %101, %103, %cst_89 {dimension_numbers = #tpu.dot_dimension_numbers<[1], [0], [0], [1], [0, 0, 1, 1], [], []>} : vector<12x32xf32>, vector<32x64xf32>, vector<12x64xf32> -> vector<12x64xf32>
      %105 = arith.addf %95, %104 : vector<12x64xf32>
      %c2_i32_90 = arith.constant 2 : i32
      %106 = arith.muli %c2_i32_90, %arg14 : i32
      %c2_i32_91 = arith.constant 2 : i32
      %107 = arith.addi %106, %c2_i32_91 : i32
      %c15_i32_92 = arith.constant 15 : i32
      %108 = arith.muli %107, %c15_i32_92 : i32
      %c1_i32_93 = arith.constant 1 : i32
      %109 = arith.addi %108, %c1_i32_93 : i32
      %110 = arith.index_cast %109 : i32 to index
      %c0_94 = arith.constant 0 : index
      %111 = vector.load %arg11[%110, %c0_94] : memref<225x32xf32, #tpu.memory_space<vmem>>, vector<12x32xf32>
      %c9 = arith.constant 9 : index
      %c0_95 = arith.constant 0 : index
      %c0_96 = arith.constant 0 : index
      %112 = vector.load %arg4[%c9, %c0_95, %c0_96] : memref<16x32x64xf32, #tpu.memory_space<vmem>>, vector<1x32x64xf32>
      %113 = vector.shape_cast %112 : vector<1x32x64xf32> to vector<32x64xf32>
      %cst_97 = arith.constant dense<0.000000e+00> : vector<12x64xf32>
      %114 = tpu.matmul %111, %113, %cst_97 {dimension_numbers = #tpu.dot_dimension_numbers<[1], [0], [0], [1], [0, 0, 1, 1], [], []>} : vector<12x32xf32>, vector<32x64xf32>, vector<12x64xf32> -> vector<12x64xf32>
      %115 = arith.addf %105, %114 : vector<12x64xf32>
      %c2_i32_98 = arith.constant 2 : i32
      %116 = arith.muli %c2_i32_98, %arg14 : i32
      %c2_i32_99 = arith.constant 2 : i32
      %117 = arith.addi %116, %c2_i32_99 : i32
      %c15_i32_100 = arith.constant 15 : i32
      %118 = arith.muli %117, %c15_i32_100 : i32
      %c2_i32_101 = arith.constant 2 : i32
      %119 = arith.addi %118, %c2_i32_101 : i32
      %120 = arith.index_cast %119 : i32 to index
      %c0_102 = arith.constant 0 : index
      %121 = vector.load %arg11[%120, %c0_102] : memref<225x32xf32, #tpu.memory_space<vmem>>, vector<12x32xf32>
      %c10 = arith.constant 10 : index
      %c0_103 = arith.constant 0 : index
      %c0_104 = arith.constant 0 : index
      %122 = vector.load %arg4[%c10, %c0_103, %c0_104] : memref<16x32x64xf32, #tpu.memory_space<vmem>>, vector<1x32x64xf32>
      %123 = vector.shape_cast %122 : vector<1x32x64xf32> to vector<32x64xf32>
      %cst_105 = arith.constant dense<0.000000e+00> : vector<12x64xf32>
      %124 = tpu.matmul %121, %123, %cst_105 {dimension_numbers = #tpu.dot_dimension_numbers<[1], [0], [0], [1], [0, 0, 1, 1], [], []>} : vector<12x32xf32>, vector<32x64xf32>, vector<12x64xf32> -> vector<12x64xf32>
      %125 = arith.addf %115, %124 : vector<12x64xf32>
      %c2_i32_106 = arith.constant 2 : i32
      %126 = arith.muli %c2_i32_106, %arg14 : i32
      %c2_i32_107 = arith.constant 2 : i32
      %127 = arith.addi %126, %c2_i32_107 : i32
      %c15_i32_108 = arith.constant 15 : i32
      %128 = arith.muli %127, %c15_i32_108 : i32
      %c3_i32_109 = arith.constant 3 : i32
      %129 = arith.addi %128, %c3_i32_109 : i32
      %130 = arith.index_cast %129 : i32 to index
      %c0_110 = arith.constant 0 : index
      %131 = vector.load %arg11[%130, %c0_110] : memref<225x32xf32, #tpu.memory_space<vmem>>, vector<12x32xf32>
      %c11 = arith.constant 11 : index
      %c0_111 = arith.constant 0 : index
      %c0_112 = arith.constant 0 : index
      %132 = vector.load %arg4[%c11, %c0_111, %c0_112] : memref<16x32x64xf32, #tpu.memory_space<vmem>>, vector<1x32x64xf32>
      %133 = vector.shape_cast %132 : vector<1x32x64xf32> to vector<32x64xf32>
      %cst_113 = arith.constant dense<0.000000e+00> : vector<12x64xf32>
      %134 = tpu.matmul %131, %133, %cst_113 {dimension_numbers = #tpu.dot_dimension_numbers<[1], [0], [0], [1], [0, 0, 1, 1], [], []>} : vector<12x32xf32>, vector<32x64xf32>, vector<12x64xf32> -> vector<12x64xf32>
      %135 = arith.addf %125, %134 : vector<12x64xf32>
      %c2_i32_114 = arith.constant 2 : i32
      %136 = arith.muli %c2_i32_114, %arg14 : i32
      %c3_i32_115 = arith.constant 3 : i32
      %137 = arith.addi %136, %c3_i32_115 : i32
      %c15_i32_116 = arith.constant 15 : i32
      %138 = arith.muli %137, %c15_i32_116 : i32
      %c0_i32_117 = arith.constant 0 : i32
      %139 = arith.addi %138, %c0_i32_117 : i32
      %140 = arith.index_cast %139 : i32 to index
      %c0_118 = arith.constant 0 : index
      %141 = vector.load %arg11[%140, %c0_118] : memref<225x32xf32, #tpu.memory_space<vmem>>, vector<12x32xf32>
      %c12 = arith.constant 12 : index
      %c0_119 = arith.constant 0 : index
      %c0_120 = arith.constant 0 : index
      %142 = vector.load %arg4[%c12, %c0_119, %c0_120] : memref<16x32x64xf32, #tpu.memory_space<vmem>>, vector<1x32x64xf32>
      %143 = vector.shape_cast %142 : vector<1x32x64xf32> to vector<32x64xf32>
      %cst_121 = arith.constant dense<0.000000e+00> : vector<12x64xf32>
      %144 = tpu.matmul %141, %143, %cst_121 {dimension_numbers = #tpu.dot_dimension_numbers<[1], [0], [0], [1], [0, 0, 1, 1], [], []>} : vector<12x32xf32>, vector<32x64xf32>, vector<12x64xf32> -> vector<12x64xf32>
      %145 = arith.addf %135, %144 : vector<12x64xf32>
      %c2_i32_122 = arith.constant 2 : i32
      %146 = arith.muli %c2_i32_122, %arg14 : i32
      %c3_i32_123 = arith.constant 3 : i32
      %147 = arith.addi %146, %c3_i32_123 : i32
      %c15_i32_124 = arith.constant 15 : i32
      %148 = arith.muli %147, %c15_i32_124 : i32
      %c1_i32_125 = arith.constant 1 : i32
      %149 = arith.addi %148, %c1_i32_125 : i32
      %150 = arith.index_cast %149 : i32 to index
      %c0_126 = arith.constant 0 : index
      %151 = vector.load %arg11[%150, %c0_126] : memref<225x32xf32, #tpu.memory_space<vmem>>, vector<12x32xf32>
      %c13 = arith.constant 13 : index
      %c0_127 = arith.constant 0 : index
      %c0_128 = arith.constant 0 : index
      %152 = vector.load %arg4[%c13, %c0_127, %c0_128] : memref<16x32x64xf32, #tpu.memory_space<vmem>>, vector<1x32x64xf32>
      %153 = vector.shape_cast %152 : vector<1x32x64xf32> to vector<32x64xf32>
      %cst_129 = arith.constant dense<0.000000e+00> : vector<12x64xf32>
      %154 = tpu.matmul %151, %153, %cst_129 {dimension_numbers = #tpu.dot_dimension_numbers<[1], [0], [0], [1], [0, 0, 1, 1], [], []>} : vector<12x32xf32>, vector<32x64xf32>, vector<12x64xf32> -> vector<12x64xf32>
      %155 = arith.addf %145, %154 : vector<12x64xf32>
      %c2_i32_130 = arith.constant 2 : i32
      %156 = arith.muli %c2_i32_130, %arg14 : i32
      %c3_i32_131 = arith.constant 3 : i32
      %157 = arith.addi %156, %c3_i32_131 : i32
      %c15_i32_132 = arith.constant 15 : i32
      %158 = arith.muli %157, %c15_i32_132 : i32
      %c2_i32_133 = arith.constant 2 : i32
      %159 = arith.addi %158, %c2_i32_133 : i32
      %160 = arith.index_cast %159 : i32 to index
      %c0_134 = arith.constant 0 : index
      %161 = vector.load %arg11[%160, %c0_134] : memref<225x32xf32, #tpu.memory_space<vmem>>, vector<12x32xf32>
      %c14 = arith.constant 14 : index
      %c0_135 = arith.constant 0 : index
      %c0_136 = arith.constant 0 : index
      %162 = vector.load %arg4[%c14, %c0_135, %c0_136] : memref<16x32x64xf32, #tpu.memory_space<vmem>>, vector<1x32x64xf32>
      %163 = vector.shape_cast %162 : vector<1x32x64xf32> to vector<32x64xf32>
      %cst_137 = arith.constant dense<0.000000e+00> : vector<12x64xf32>
      %164 = tpu.matmul %161, %163, %cst_137 {dimension_numbers = #tpu.dot_dimension_numbers<[1], [0], [0], [1], [0, 0, 1, 1], [], []>} : vector<12x32xf32>, vector<32x64xf32>, vector<12x64xf32> -> vector<12x64xf32>
      %165 = arith.addf %155, %164 : vector<12x64xf32>
      %c2_i32_138 = arith.constant 2 : i32
      %166 = arith.muli %c2_i32_138, %arg14 : i32
      %c3_i32_139 = arith.constant 3 : i32
      %167 = arith.addi %166, %c3_i32_139 : i32
      %c15_i32_140 = arith.constant 15 : i32
      %168 = arith.muli %167, %c15_i32_140 : i32
      %c3_i32_141 = arith.constant 3 : i32
      %169 = arith.addi %168, %c3_i32_141 : i32
      %170 = arith.index_cast %169 : i32 to index
      %c0_142 = arith.constant 0 : index
      %171 = vector.load %arg11[%170, %c0_142] : memref<225x32xf32, #tpu.memory_space<vmem>>, vector<12x32xf32>
      %c15 = arith.constant 15 : index
      %c0_143 = arith.constant 0 : index
      %c0_144 = arith.constant 0 : index
      %172 = vector.load %arg4[%c15, %c0_143, %c0_144] : memref<16x32x64xf32, #tpu.memory_space<vmem>>, vector<1x32x64xf32>
      %173 = vector.shape_cast %172 : vector<1x32x64xf32> to vector<32x64xf32>
      %cst_145 = arith.constant dense<0.000000e+00> : vector<12x64xf32>
      %174 = tpu.matmul %171, %173, %cst_145 {dimension_numbers = #tpu.dot_dimension_numbers<[1], [0], [0], [1], [0, 0, 1, 1], [], []>} : vector<12x32xf32>, vector<32x64xf32>, vector<12x64xf32> -> vector<12x64xf32>
      %175 = arith.addf %165, %174 : vector<12x64xf32>
      %cst_146 = arith.constant dense<0.000000e+00> : vector<6x64xf32>
      %176 = tpu.matmul %11, %175, %cst_146 {dimension_numbers = #tpu.dot_dimension_numbers<[1], [0], [0], [1], [0, 0, 1, 1], [], []>} : vector<6x12xf32>, vector<12x64xf32>, vector<6x64xf32> -> vector<6x64xf32>
      %177 = vector.broadcast %1 : vector<1x64xf32> to vector<6x64xf32>
      %178 = arith.addf %176, %177 : vector<6x64xf32>
      %cst_147 = arith.constant 0.000000e+00 : f32
      %179 = vector.broadcast %cst_147 : f32 to vector<6x64xf32>
      %180 = arith.maximumf %178, %179 : vector<6x64xf32>
      %c6_i32_148 = arith.constant 6 : i32
      %181 = arith.muli %arg14, %c6_i32_148 : i32
      %182 = arith.index_cast %181 : i32 to index
      %c0_149 = arith.constant 0 : index
      %183 = vector.load %arg12[%182, %c0_149] : memref<36x64xf32, #tpu.memory_space<vmem>>, vector<6x64xf32>
      tpu.vector_store %arg12[%182, %c0_149], %180 {strides = array<i32>} : memref<36x64xf32, #tpu.memory_space<vmem>>, vector<6x64xf32>,
    }
    %c6_i32_10 = arith.constant 6 : i32
    %c0_i32_11 = arith.constant 0 : i32
    %c4_i32 = arith.constant 4 : i32
    %13 = arith.addi %c0_i32_11, %c4_i32 : i32
    %c1_i32_12 = arith.constant 1 : i32
    scf.for %arg14 = %c0_i32_11 to %13 step %c1_i32_12  : i32 {
      %cst = arith.constant 0.000000e+00 : f32
      %15 = vector.broadcast %cst : f32 to vector<4x64xf32>
      %c0_i32_18 = arith.constant 0 : i32
      %16 = arith.addi %arg14, %c0_i32_18 : i32
      %c6_i32_19 = arith.constant 6 : i32
      %17 = arith.muli %16, %c6_i32_19 : i32
      %c0_i32_20 = arith.constant 0 : i32
      %18 = arith.addi %17, %c0_i32_20 : i32
      %19 = arith.index_cast %18 : i32 to index
      %c0_21 = arith.constant 0 : index
      %20 = vector.load %arg12[%19, %c0_21] : memref<36x64xf32, #tpu.memory_space<vmem>>, vector<4x64xf32>
      %c0_22 = arith.constant 0 : index
      %c0_23 = arith.constant 0 : index
      %c0_24 = arith.constant 0 : index
      %21 = vector.load %arg6[%c0_22, %c0_23, %c0_24] : memref<9x64x64xf32, #tpu.memory_space<vmem>>, vector<1x64x64xf32>
      %22 = vector.shape_cast %21 : vector<1x64x64xf32> to vector<64x64xf32>
      %cst_25 = arith.constant dense<0.000000e+00> : vector<4x64xf32>
      %23 = tpu.matmul %20, %22, %cst_25 {dimension_numbers = #tpu.dot_dimension_numbers<[1], [0], [0], [1], [0, 0, 1, 1], [], []>} : vector<4x64xf32>, vector<64x64xf32>, vector<4x64xf32> -> vector<4x64xf32>
      %24 = arith.addf %15, %23 : vector<4x64xf32>
      %c0_i32_26 = arith.constant 0 : i32
      %25 = arith.addi %arg14, %c0_i32_26 : i32
      %c6_i32_27 = arith.constant 6 : i32
      %26 = arith.muli %25, %c6_i32_27 : i32
      %c1_i32_28 = arith.constant 1 : i32
      %27 = arith.addi %26, %c1_i32_28 : i32
      %28 = arith.index_cast %27 : i32 to index
      %c0_29 = arith.constant 0 : index
      %29 = vector.load %arg12[%28, %c0_29] : memref<36x64xf32, #tpu.memory_space<vmem>>, vector<4x64xf32>
      %c1 = arith.constant 1 : index
      %c0_30 = arith.constant 0 : index
      %c0_31 = arith.constant 0 : index
      %30 = vector.load %arg6[%c1, %c0_30, %c0_31] : memref<9x64x64xf32, #tpu.memory_space<vmem>>, vector<1x64x64xf32>
      %31 = vector.shape_cast %30 : vector<1x64x64xf32> to vector<64x64xf32>
      %cst_32 = arith.constant dense<0.000000e+00> : vector<4x64xf32>
      %32 = tpu.matmul %29, %31, %cst_32 {dimension_numbers = #tpu.dot_dimension_numbers<[1], [0], [0], [1], [0, 0, 1, 1], [], []>} : vector<4x64xf32>, vector<64x64xf32>, vector<4x64xf32> -> vector<4x64xf32>
      %33 = arith.addf %24, %32 : vector<4x64xf32>
      %c0_i32_33 = arith.constant 0 : i32
      %34 = arith.addi %arg14, %c0_i32_33 : i32
      %c6_i32_34 = arith.constant 6 : i32
      %35 = arith.muli %34, %c6_i32_34 : i32
      %c2_i32_35 = arith.constant 2 : i32
      %36 = arith.addi %35, %c2_i32_35 : i32
      %37 = arith.index_cast %36 : i32 to index
      %c0_36 = arith.constant 0 : index
      %38 = vector.load %arg12[%37, %c0_36] : memref<36x64xf32, #tpu.memory_space<vmem>>, vector<4x64xf32>
      %c2 = arith.constant 2 : index
      %c0_37 = arith.constant 0 : index
      %c0_38 = arith.constant 0 : index
      %39 = vector.load %arg6[%c2, %c0_37, %c0_38] : memref<9x64x64xf32, #tpu.memory_space<vmem>>, vector<1x64x64xf32>
      %40 = vector.shape_cast %39 : vector<1x64x64xf32> to vector<64x64xf32>
      %cst_39 = arith.constant dense<0.000000e+00> : vector<4x64xf32>
      %41 = tpu.matmul %38, %40, %cst_39 {dimension_numbers = #tpu.dot_dimension_numbers<[1], [0], [0], [1], [0, 0, 1, 1], [], []>} : vector<4x64xf32>, vector<64x64xf32>, vector<4x64xf32> -> vector<4x64xf32>
      %42 = arith.addf %33, %41 : vector<4x64xf32>
      %c1_i32_40 = arith.constant 1 : i32
      %43 = arith.addi %arg14, %c1_i32_40 : i32
      %c6_i32_41 = arith.constant 6 : i32
      %44 = arith.muli %43, %c6_i32_41 : i32
      %c0_i32_42 = arith.constant 0 : i32
      %45 = arith.addi %44, %c0_i32_42 : i32
      %46 = arith.index_cast %45 : i32 to index
      %c0_43 = arith.constant 0 : index
      %47 = vector.load %arg12[%46, %c0_43] : memref<36x64xf32, #tpu.memory_space<vmem>>, vector<4x64xf32>
      %c3 = arith.constant 3 : index
      %c0_44 = arith.constant 0 : index
      %c0_45 = arith.constant 0 : index
      %48 = vector.load %arg6[%c3, %c0_44, %c0_45] : memref<9x64x64xf32, #tpu.memory_space<vmem>>, vector<1x64x64xf32>
      %49 = vector.shape_cast %48 : vector<1x64x64xf32> to vector<64x64xf32>
      %cst_46 = arith.constant dense<0.000000e+00> : vector<4x64xf32>
      %50 = tpu.matmul %47, %49, %cst_46 {dimension_numbers = #tpu.dot_dimension_numbers<[1], [0], [0], [1], [0, 0, 1, 1], [], []>} : vector<4x64xf32>, vector<64x64xf32>, vector<4x64xf32> -> vector<4x64xf32>
      %51 = arith.addf %42, %50 : vector<4x64xf32>
      %c1_i32_47 = arith.constant 1 : i32
      %52 = arith.addi %arg14, %c1_i32_47 : i32
      %c6_i32_48 = arith.constant 6 : i32
      %53 = arith.muli %52, %c6_i32_48 : i32
      %c1_i32_49 = arith.constant 1 : i32
      %54 = arith.addi %53, %c1_i32_49 : i32
      %55 = arith.index_cast %54 : i32 to index
      %c0_50 = arith.constant 0 : index
      %56 = vector.load %arg12[%55, %c0_50] : memref<36x64xf32, #tpu.memory_space<vmem>>, vector<4x64xf32>
      %c4 = arith.constant 4 : index
      %c0_51 = arith.constant 0 : index
      %c0_52 = arith.constant 0 : index
      %57 = vector.load %arg6[%c4, %c0_51, %c0_52] : memref<9x64x64xf32, #tpu.memory_space<vmem>>, vector<1x64x64xf32>
      %58 = vector.shape_cast %57 : vector<1x64x64xf32> to vector<64x64xf32>
      %cst_53 = arith.constant dense<0.000000e+00> : vector<4x64xf32>
      %59 = tpu.matmul %56, %58, %cst_53 {dimension_numbers = #tpu.dot_dimension_numbers<[1], [0], [0], [1], [0, 0, 1, 1], [], []>} : vector<4x64xf32>, vector<64x64xf32>, vector<4x64xf32> -> vector<4x64xf32>
      %60 = arith.addf %51, %59 : vector<4x64xf32>
      %c1_i32_54 = arith.constant 1 : i32
      %61 = arith.addi %arg14, %c1_i32_54 : i32
      %c6_i32_55 = arith.constant 6 : i32
      %62 = arith.muli %61, %c6_i32_55 : i32
      %c2_i32_56 = arith.constant 2 : i32
      %63 = arith.addi %62, %c2_i32_56 : i32
      %64 = arith.index_cast %63 : i32 to index
      %c0_57 = arith.constant 0 : index
      %65 = vector.load %arg12[%64, %c0_57] : memref<36x64xf32, #tpu.memory_space<vmem>>, vector<4x64xf32>
      %c5 = arith.constant 5 : index
      %c0_58 = arith.constant 0 : index
      %c0_59 = arith.constant 0 : index
      %66 = vector.load %arg6[%c5, %c0_58, %c0_59] : memref<9x64x64xf32, #tpu.memory_space<vmem>>, vector<1x64x64xf32>
      %67 = vector.shape_cast %66 : vector<1x64x64xf32> to vector<64x64xf32>
      %cst_60 = arith.constant dense<0.000000e+00> : vector<4x64xf32>
      %68 = tpu.matmul %65, %67, %cst_60 {dimension_numbers = #tpu.dot_dimension_numbers<[1], [0], [0], [1], [0, 0, 1, 1], [], []>} : vector<4x64xf32>, vector<64x64xf32>, vector<4x64xf32> -> vector<4x64xf32>
      %69 = arith.addf %60, %68 : vector<4x64xf32>
      %c2_i32_61 = arith.constant 2 : i32
      %70 = arith.addi %arg14, %c2_i32_61 : i32
      %c6_i32_62 = arith.constant 6 : i32
      %71 = arith.muli %70, %c6_i32_62 : i32
      %c0_i32_63 = arith.constant 0 : i32
      %72 = arith.addi %71, %c0_i32_63 : i32
      %73 = arith.index_cast %72 : i32 to index
      %c0_64 = arith.constant 0 : index
      %74 = vector.load %arg12[%73, %c0_64] : memref<36x64xf32, #tpu.memory_space<vmem>>, vector<4x64xf32>
      %c6 = arith.constant 6 : index
      %c0_65 = arith.constant 0 : index
      %c0_66 = arith.constant 0 : index
      %75 = vector.load %arg6[%c6, %c0_65, %c0_66] : memref<9x64x64xf32, #tpu.memory_space<vmem>>, vector<1x64x64xf32>
      %76 = vector.shape_cast %75 : vector<1x64x64xf32> to vector<64x64xf32>
      %cst_67 = arith.constant dense<0.000000e+00> : vector<4x64xf32>
      %77 = tpu.matmul %74, %76, %cst_67 {dimension_numbers = #tpu.dot_dimension_numbers<[1], [0], [0], [1], [0, 0, 1, 1], [], []>} : vector<4x64xf32>, vector<64x64xf32>, vector<4x64xf32> -> vector<4x64xf32>
      %78 = arith.addf %69, %77 : vector<4x64xf32>
      %c2_i32_68 = arith.constant 2 : i32
      %79 = arith.addi %arg14, %c2_i32_68 : i32
      %c6_i32_69 = arith.constant 6 : i32
      %80 = arith.muli %79, %c6_i32_69 : i32
      %c1_i32_70 = arith.constant 1 : i32
      %81 = arith.addi %80, %c1_i32_70 : i32
      %82 = arith.index_cast %81 : i32 to index
      %c0_71 = arith.constant 0 : index
      %83 = vector.load %arg12[%82, %c0_71] : memref<36x64xf32, #tpu.memory_space<vmem>>, vector<4x64xf32>
      %c7 = arith.constant 7 : index
      %c0_72 = arith.constant 0 : index
      %c0_73 = arith.constant 0 : index
      %84 = vector.load %arg6[%c7, %c0_72, %c0_73] : memref<9x64x64xf32, #tpu.memory_space<vmem>>, vector<1x64x64xf32>
      %85 = vector.shape_cast %84 : vector<1x64x64xf32> to vector<64x64xf32>
      %cst_74 = arith.constant dense<0.000000e+00> : vector<4x64xf32>
      %86 = tpu.matmul %83, %85, %cst_74 {dimension_numbers = #tpu.dot_dimension_numbers<[1], [0], [0], [1], [0, 0, 1, 1], [], []>} : vector<4x64xf32>, vector<64x64xf32>, vector<4x64xf32> -> vector<4x64xf32>
      %87 = arith.addf %78, %86 : vector<4x64xf32>
      %c2_i32_75 = arith.constant 2 : i32
      %88 = arith.addi %arg14, %c2_i32_75 : i32
      %c6_i32_76 = arith.constant 6 : i32
      %89 = arith.muli %88, %c6_i32_76 : i32
      %c2_i32_77 = arith.constant 2 : i32
      %90 = arith.addi %89, %c2_i32_77 : i32
      %91 = arith.index_cast %90 : i32 to index
      %c0_78 = arith.constant 0 : index
      %92 = vector.load %arg12[%91, %c0_78] : memref<36x64xf32, #tpu.memory_space<vmem>>, vector<4x64xf32>
      %c8 = arith.constant 8 : index
      %c0_79 = arith.constant 0 : index
      %c0_80 = arith.constant 0 : index
      %93 = vector.load %arg6[%c8, %c0_79, %c0_80] : memref<9x64x64xf32, #tpu.memory_space<vmem>>, vector<1x64x64xf32>
      %94 = vector.shape_cast %93 : vector<1x64x64xf32> to vector<64x64xf32>
      %cst_81 = arith.constant dense<0.000000e+00> : vector<4x64xf32>
      %95 = tpu.matmul %92, %94, %cst_81 {dimension_numbers = #tpu.dot_dimension_numbers<[1], [0], [0], [1], [0, 0, 1, 1], [], []>} : vector<4x64xf32>, vector<64x64xf32>, vector<4x64xf32> -> vector<4x64xf32>
      %96 = arith.addf %87, %95 : vector<4x64xf32>
      %97 = vector.broadcast %2 : vector<1x64xf32> to vector<4x64xf32>
      %98 = arith.addf %96, %97 : vector<4x64xf32>
      %cst_82 = arith.constant 0.000000e+00 : f32
      %99 = vector.broadcast %cst_82 : f32 to vector<4x64xf32>
      %100 = arith.maximumf %98, %99 : vector<4x64xf32>
      %c4_i32_83 = arith.constant 4 : i32
      %101 = arith.muli %arg14, %c4_i32_83 : i32
      %102 = arith.index_cast %101 : i32 to index
      %c0_84 = arith.constant 0 : index
      %103 = vector.load %arg13[%102, %c0_84] : memref<16x64xf32, #tpu.memory_space<vmem>>, vector<4x64xf32>
      tpu.vector_store %arg13[%102, %c0_84], %100 {strides = array<i32>} : memref<16x64xf32, #tpu.memory_space<vmem>>, vector<4x64xf32>,
    }
    %c4_i32_13 = arith.constant 4 : i32
    %c0_i32_14 = arith.constant 0 : i32
    %c2_i32_15 = arith.constant 2 : i32
    %14 = arith.addi %c0_i32_14, %c2_i32_15 : i32
    %c1_i32_16 = arith.constant 1 : i32
    scf.for %arg14 = %c0_i32_14 to %14 step %c1_i32_16  : i32 {
      %cst = arith.constant 0.000000e+00 : f32
      %15 = vector.broadcast %cst : f32 to vector<2x16xf32>
      %c0_i32_18 = arith.constant 0 : i32
      %16 = arith.addi %arg14, %c0_i32_18 : i32
      %c4_i32_19 = arith.constant 4 : i32
      %17 = arith.muli %16, %c4_i32_19 : i32
      %c0_i32_20 = arith.constant 0 : i32
      %18 = arith.addi %17, %c0_i32_20 : i32
      %19 = arith.index_cast %18 : i32 to index
      %c0_21 = arith.constant 0 : index
      %20 = vector.load %arg13[%19, %c0_21] : memref<16x64xf32, #tpu.memory_space<vmem>>, vector<2x64xf32>
      %c0_22 = arith.constant 0 : index
      %c0_23 = arith.constant 0 : index
      %c0_24 = arith.constant 0 : index
      %21 = vector.load %arg8[%c0_22, %c0_23, %c0_24] : memref<9x64x16xf32, #tpu.memory_space<vmem>>, vector<1x64x16xf32>
      %22 = vector.shape_cast %21 : vector<1x64x16xf32> to vector<64x16xf32>
      %cst_25 = arith.constant dense<0.000000e+00> : vector<2x16xf32>
      %23 = tpu.matmul %20, %22, %cst_25 {dimension_numbers = #tpu.dot_dimension_numbers<[1], [0], [0], [1], [0, 0, 1, 1], [], []>} : vector<2x64xf32>, vector<64x16xf32>, vector<2x16xf32> -> vector<2x16xf32>
      %24 = arith.addf %15, %23 : vector<2x16xf32>
      %c0_i32_26 = arith.constant 0 : i32
      %25 = arith.addi %arg14, %c0_i32_26 : i32
      %c4_i32_27 = arith.constant 4 : i32
      %26 = arith.muli %25, %c4_i32_27 : i32
      %c1_i32_28 = arith.constant 1 : i32
      %27 = arith.addi %26, %c1_i32_28 : i32
      %28 = arith.index_cast %27 : i32 to index
      %c0_29 = arith.constant 0 : index
      %29 = vector.load %arg13[%28, %c0_29] : memref<16x64xf32, #tpu.memory_space<vmem>>, vector<2x64xf32>
      %c1 = arith.constant 1 : index
      %c0_30 = arith.constant 0 : index
      %c0_31 = arith.constant 0 : index
      %30 = vector.load %arg8[%c1, %c0_30, %c0_31] : memref<9x64x16xf32, #tpu.memory_space<vmem>>, vector<1x64x16xf32>
      %31 = vector.shape_cast %30 : vector<1x64x16xf32> to vector<64x16xf32>
      %cst_32 = arith.constant dense<0.000000e+00> : vector<2x16xf32>
      %32 = tpu.matmul %29, %31, %cst_32 {dimension_numbers = #tpu.dot_dimension_numbers<[1], [0], [0], [1], [0, 0, 1, 1], [], []>} : vector<2x64xf32>, vector<64x16xf32>, vector<2x16xf32> -> vector<2x16xf32>
      %33 = arith.addf %24, %32 : vector<2x16xf32>
      %c0_i32_33 = arith.constant 0 : i32
      %34 = arith.addi %arg14, %c0_i32_33 : i32
      %c4_i32_34 = arith.constant 4 : i32
      %35 = arith.muli %34, %c4_i32_34 : i32
      %c2_i32_35 = arith.constant 2 : i32
      %36 = arith.addi %35, %c2_i32_35 : i32
      %37 = arith.index_cast %36 : i32 to index
      %c0_36 = arith.constant 0 : index
      %38 = vector.load %arg13[%37, %c0_36] : memref<16x64xf32, #tpu.memory_space<vmem>>, vector<2x64xf32>
      %c2 = arith.constant 2 : index
      %c0_37 = arith.constant 0 : index
      %c0_38 = arith.constant 0 : index
      %39 = vector.load %arg8[%c2, %c0_37, %c0_38] : memref<9x64x16xf32, #tpu.memory_space<vmem>>, vector<1x64x16xf32>
      %40 = vector.shape_cast %39 : vector<1x64x16xf32> to vector<64x16xf32>
      %cst_39 = arith.constant dense<0.000000e+00> : vector<2x16xf32>
      %41 = tpu.matmul %38, %40, %cst_39 {dimension_numbers = #tpu.dot_dimension_numbers<[1], [0], [0], [1], [0, 0, 1, 1], [], []>} : vector<2x64xf32>, vector<64x16xf32>, vector<2x16xf32> -> vector<2x16xf32>
      %42 = arith.addf %33, %41 : vector<2x16xf32>
      %c1_i32_40 = arith.constant 1 : i32
      %43 = arith.addi %arg14, %c1_i32_40 : i32
      %c4_i32_41 = arith.constant 4 : i32
      %44 = arith.muli %43, %c4_i32_41 : i32
      %c0_i32_42 = arith.constant 0 : i32
      %45 = arith.addi %44, %c0_i32_42 : i32
      %46 = arith.index_cast %45 : i32 to index
      %c0_43 = arith.constant 0 : index
      %47 = vector.load %arg13[%46, %c0_43] : memref<16x64xf32, #tpu.memory_space<vmem>>, vector<2x64xf32>
      %c3 = arith.constant 3 : index
      %c0_44 = arith.constant 0 : index
      %c0_45 = arith.constant 0 : index
      %48 = vector.load %arg8[%c3, %c0_44, %c0_45] : memref<9x64x16xf32, #tpu.memory_space<vmem>>, vector<1x64x16xf32>
      %49 = vector.shape_cast %48 : vector<1x64x16xf32> to vector<64x16xf32>
      %cst_46 = arith.constant dense<0.000000e+00> : vector<2x16xf32>
      %50 = tpu.matmul %47, %49, %cst_46 {dimension_numbers = #tpu.dot_dimension_numbers<[1], [0], [0], [1], [0, 0, 1, 1], [], []>} : vector<2x64xf32>, vector<64x16xf32>, vector<2x16xf32> -> vector<2x16xf32>
      %51 = arith.addf %42, %50 : vector<2x16xf32>
      %c1_i32_47 = arith.constant 1 : i32
      %52 = arith.addi %arg14, %c1_i32_47 : i32
      %c4_i32_48 = arith.constant 4 : i32
      %53 = arith.muli %52, %c4_i32_48 : i32
      %c1_i32_49 = arith.constant 1 : i32
      %54 = arith.addi %53, %c1_i32_49 : i32
      %55 = arith.index_cast %54 : i32 to index
      %c0_50 = arith.constant 0 : index
      %56 = vector.load %arg13[%55, %c0_50] : memref<16x64xf32, #tpu.memory_space<vmem>>, vector<2x64xf32>
      %c4 = arith.constant 4 : index
      %c0_51 = arith.constant 0 : index
      %c0_52 = arith.constant 0 : index
      %57 = vector.load %arg8[%c4, %c0_51, %c0_52] : memref<9x64x16xf32, #tpu.memory_space<vmem>>, vector<1x64x16xf32>
      %58 = vector.shape_cast %57 : vector<1x64x16xf32> to vector<64x16xf32>
      %cst_53 = arith.constant dense<0.000000e+00> : vector<2x16xf32>
      %59 = tpu.matmul %56, %58, %cst_53 {dimension_numbers = #tpu.dot_dimension_numbers<[1], [0], [0], [1], [0, 0, 1, 1], [], []>} : vector<2x64xf32>, vector<64x16xf32>, vector<2x16xf32> -> vector<2x16xf32>
      %60 = arith.addf %51, %59 : vector<2x16xf32>
      %c1_i32_54 = arith.constant 1 : i32
      %61 = arith.addi %arg14, %c1_i32_54 : i32
      %c4_i32_55 = arith.constant 4 : i32
      %62 = arith.muli %61, %c4_i32_55 : i32
      %c2_i32_56 = arith.constant 2 : i32
      %63 = arith.addi %62, %c2_i32_56 : i32
      %64 = arith.index_cast %63 : i32 to index
      %c0_57 = arith.constant 0 : index
      %65 = vector.load %arg13[%64, %c0_57] : memref<16x64xf32, #tpu.memory_space<vmem>>, vector<2x64xf32>
      %c5 = arith.constant 5 : index
      %c0_58 = arith.constant 0 : index
      %c0_59 = arith.constant 0 : index
      %66 = vector.load %arg8[%c5, %c0_58, %c0_59] : memref<9x64x16xf32, #tpu.memory_space<vmem>>, vector<1x64x16xf32>
      %67 = vector.shape_cast %66 : vector<1x64x16xf32> to vector<64x16xf32>
      %cst_60 = arith.constant dense<0.000000e+00> : vector<2x16xf32>
      %68 = tpu.matmul %65, %67, %cst_60 {dimension_numbers = #tpu.dot_dimension_numbers<[1], [0], [0], [1], [0, 0, 1, 1], [], []>} : vector<2x64xf32>, vector<64x16xf32>, vector<2x16xf32> -> vector<2x16xf32>
      %69 = arith.addf %60, %68 : vector<2x16xf32>
      %c2_i32_61 = arith.constant 2 : i32
      %70 = arith.addi %arg14, %c2_i32_61 : i32
      %c4_i32_62 = arith.constant 4 : i32
      %71 = arith.muli %70, %c4_i32_62 : i32
      %c0_i32_63 = arith.constant 0 : i32
      %72 = arith.addi %71, %c0_i32_63 : i32
      %73 = arith.index_cast %72 : i32 to index
      %c0_64 = arith.constant 0 : index
      %74 = vector.load %arg13[%73, %c0_64] : memref<16x64xf32, #tpu.memory_space<vmem>>, vector<2x64xf32>
      %c6 = arith.constant 6 : index
      %c0_65 = arith.constant 0 : index
      %c0_66 = arith.constant 0 : index
      %75 = vector.load %arg8[%c6, %c0_65, %c0_66] : memref<9x64x16xf32, #tpu.memory_space<vmem>>, vector<1x64x16xf32>
      %76 = vector.shape_cast %75 : vector<1x64x16xf32> to vector<64x16xf32>
      %cst_67 = arith.constant dense<0.000000e+00> : vector<2x16xf32>
      %77 = tpu.matmul %74, %76, %cst_67 {dimension_numbers = #tpu.dot_dimension_numbers<[1], [0], [0], [1], [0, 0, 1, 1], [], []>} : vector<2x64xf32>, vector<64x16xf32>, vector<2x16xf32> -> vector<2x16xf32>
      %78 = arith.addf %69, %77 : vector<2x16xf32>
      %c2_i32_68 = arith.constant 2 : i32
      %79 = arith.addi %arg14, %c2_i32_68 : i32
      %c4_i32_69 = arith.constant 4 : i32
      %80 = arith.muli %79, %c4_i32_69 : i32
      %c1_i32_70 = arith.constant 1 : i32
      %81 = arith.addi %80, %c1_i32_70 : i32
      %82 = arith.index_cast %81 : i32 to index
      %c0_71 = arith.constant 0 : index
      %83 = vector.load %arg13[%82, %c0_71] : memref<16x64xf32, #tpu.memory_space<vmem>>, vector<2x64xf32>
      %c7 = arith.constant 7 : index
      %c0_72 = arith.constant 0 : index
      %c0_73 = arith.constant 0 : index
      %84 = vector.load %arg8[%c7, %c0_72, %c0_73] : memref<9x64x16xf32, #tpu.memory_space<vmem>>, vector<1x64x16xf32>
      %85 = vector.shape_cast %84 : vector<1x64x16xf32> to vector<64x16xf32>
      %cst_74 = arith.constant dense<0.000000e+00> : vector<2x16xf32>
      %86 = tpu.matmul %83, %85, %cst_74 {dimension_numbers = #tpu.dot_dimension_numbers<[1], [0], [0], [1], [0, 0, 1, 1], [], []>} : vector<2x64xf32>, vector<64x16xf32>, vector<2x16xf32> -> vector<2x16xf32>
      %87 = arith.addf %78, %86 : vector<2x16xf32>
      %c2_i32_75 = arith.constant 2 : i32
      %88 = arith.addi %arg14, %c2_i32_75 : i32
      %c4_i32_76 = arith.constant 4 : i32
      %89 = arith.muli %88, %c4_i32_76 : i32
      %c2_i32_77 = arith.constant 2 : i32
      %90 = arith.addi %89, %c2_i32_77 : i32
      %91 = arith.index_cast %90 : i32 to index
      %c0_78 = arith.constant 0 : index
      %92 = vector.load %arg13[%91, %c0_78] : memref<16x64xf32, #tpu.memory_space<vmem>>, vector<2x64xf32>
      %c8 = arith.constant 8 : index
      %c0_79 = arith.constant 0 : index
      %c0_80 = arith.constant 0 : index
      %93 = vector.load %arg8[%c8, %c0_79, %c0_80] : memref<9x64x16xf32, #tpu.memory_space<vmem>>, vector<1x64x16xf32>
      %94 = vector.shape_cast %93 : vector<1x64x16xf32> to vector<64x16xf32>
      %cst_81 = arith.constant dense<0.000000e+00> : vector<2x16xf32>
      %95 = tpu.matmul %92, %94, %cst_81 {dimension_numbers = #tpu.dot_dimension_numbers<[1], [0], [0], [1], [0, 0, 1, 1], [], []>} : vector<2x64xf32>, vector<64x16xf32>, vector<2x16xf32> -> vector<2x16xf32>
      %96 = arith.addf %87, %95 : vector<2x16xf32>
      %97 = vector.broadcast %3 : vector<1x16xf32> to vector<2x16xf32>
      %98 = arith.addf %96, %97 : vector<2x16xf32>
      %cst_82 = arith.constant 0.000000e+00 : f32
      %99 = vector.broadcast %cst_82 : f32 to vector<2x16xf32>
      %100 = arith.maximumf %98, %99 : vector<2x16xf32>
      %c2_i32_83 = arith.constant 2 : i32
      %101 = arith.muli %arg14, %c2_i32_83 : i32
      %c0_84 = arith.constant 0 : index
      %102 = arith.index_cast %101 : i32 to index
      %c0_85 = arith.constant 0 : index
      %103 = vector.load %arg10[%c0_84, %102, %c0_85] : memref<1x4x16xf32, #tpu.memory_space<vmem>>, vector<1x2x16xf32>
      %104 = vector.shape_cast %103 : vector<1x2x16xf32> to vector<2x16xf32>
      %105 = vector.shape_cast %100 : vector<2x16xf32> to vector<1x2x16xf32>
      tpu.vector_store %arg10[%c0_84, %102, %c0_85], %105 {strides = array<i32>} : memref<1x4x16xf32, #tpu.memory_space<vmem>>, vector<1x2x16xf32>,
    }
    %c2_i32_17 = arith.constant 2 : i32
    return
  }
  func.func @transform_0(%arg0: i32) -> (i32, i32, i32) {
    %c0_i32 = arith.constant 0 : i32
    %c0_i32_0 = arith.constant 0 : i32
    %c0_i32_1 = arith.constant 0 : i32
    return %arg0, %c0_i32, %c0_i32_0 : i32, i32, i32
  }
  func.func @transform_1(%arg0: i32) -> (i32, i32, i32) {
    %c0_i32 = arith.constant 0 : i32
    %c0_i32_0 = arith.constant 0 : i32
    %c0_i32_1 = arith.constant 0 : i32
    %c0_i32_2 = arith.constant 0 : i32
    return %c0_i32, %c0_i32_0, %c0_i32_1 : i32, i32, i32
  }
  func.func @transform_2(%arg0: i32) -> (i32, i32) {
    %c0_i32 = arith.constant 0 : i32
    %c0_i32_0 = arith.constant 0 : i32
    %c0_i32_1 = arith.constant 0 : i32
    return %c0_i32, %c0_i32_0 : i32, i32
  }
  func.func @transform_3(%arg0: i32) -> (i32, i32, i32) {
    %c0_i32 = arith.constant 0 : i32
    %c0_i32_0 = arith.constant 0 : i32
    %c0_i32_1 = arith.constant 0 : i32
    %c0_i32_2 = arith.constant 0 : i32
    return %c0_i32, %c0_i32_0, %c0_i32_1 : i32, i32, i32
  }
  func.func @transform_4(%arg0: i32) -> (i32, i32) {
    %c0_i32 = arith.constant 0 : i32
    %c0_i32_0 = arith.constant 0 : i32
    %c0_i32_1 = arith.constant 0 : i32
    return %c0_i32, %c0_i32_0 : i32, i32
  }
  func.func @transform_5(%arg0: i32) -> (i32, i32, i32) {
    %c0_i32 = arith.constant 0 : i32
    %c0_i32_0 = arith.constant 0 : i32
    %c0_i32_1 = arith.constant 0 : i32
    %c0_i32_2 = arith.constant 0 : i32
    return %c0_i32, %c0_i32_0, %c0_i32_1 : i32, i32, i32
  }
  func.func @transform_6(%arg0: i32) -> (i32, i32) {
    %c0_i32 = arith.constant 0 : i32
    %c0_i32_0 = arith.constant 0 : i32
    %c0_i32_1 = arith.constant 0 : i32
    return %c0_i32, %c0_i32_0 : i32, i32
  }
  func.func @transform_7(%arg0: i32) -> (i32, i32, i32) {
    %c0_i32 = arith.constant 0 : i32
    %c0_i32_0 = arith.constant 0 : i32
    %c0_i32_1 = arith.constant 0 : i32
    %c0_i32_2 = arith.constant 0 : i32
    return %c0_i32, %c0_i32_0, %c0_i32_1 : i32, i32, i32
  }
  func.func @transform_8(%arg0: i32) -> (i32, i32) {
    %c0_i32 = arith.constant 0 : i32
    %c0_i32_0 = arith.constant 0 : i32
    %c0_i32_1 = arith.constant 0 : i32
    return %c0_i32, %c0_i32_0 : i32, i32
  }
  func.func @transform_9(%arg0: i32) -> (i32, i32, i32) {
    %c0_i32 = arith.constant 0 : i32
    %c0_i32_0 = arith.constant 0 : i32
    %c0_i32_1 = arith.constant 0 : i32
    return %arg0, %c0_i32, %c0_i32_0 : i32, i32, i32
  }
}

</mosaic_0001>

<llo_original>
// kernel: encoder_forward.1
$region0: #{encoder_forward.1}
  #allocation0 [shape = 'u32[]', space=smem, size = 0x4, offset = 0x4, fixed_abs, tag = 'smem constant byte address 0x4 - core index']
  #allocation1 [shape = 'u32[72,128]{1,0:T(1,128)}', space=vmem, size = 0x9000, scoped, tag = 'internal scratch']
  #allocation2 [shape = 'f32[225,32]{1,0:T(8,128)}', space=vmem, size = 0x1d000, scoped, tag = 'scratch operand']
  #allocation3 [shape = 'f32[36,64]{1,0:T(8,128)}', space=vmem, size = 0x5000, scoped, tag = 'scratch operand']
  #allocation4 [shape = 'f32[16,64]{1,0:T(8,128)}', space=vmem, size = 0x2000, scoped, tag = 'scratch operand']
  %s0 = inlined_call_operand.vmem [shape: f32[2,256,64], index: 0, kind: input, shape index: {}]
  %s1 = inlined_call_operand.vmem [shape: f32[4,64,32], index: 1, kind: input, shape index: {}]
  %s2 = inlined_call_operand.vmem [shape: f32[1,32], index: 2, kind: input, shape index: {}]
  %s3 = inlined_call_operand.vmem [shape: f32[16,32,64], index: 3, kind: input, shape index: {}]
  %s4 = inlined_call_operand.vmem [shape: f32[1,64], index: 4, kind: input, shape index: {}]
  %s5 = inlined_call_operand.vmem [shape: f32[9,64,64], index: 5, kind: input, shape index: {}]
  %s6 = inlined_call_operand.vmem [shape: f32[1,64], index: 6, kind: input, shape index: {}]
  %s7 = inlined_call_operand.vmem [shape: f32[9,64,16], index: 7, kind: input, shape index: {}]
  %s8 = inlined_call_operand.vmem [shape: f32[1,16], index: 8, kind: input, shape index: {}]
  %s9 = inlined_call_operand.hbm [shape: f32[2,4,16], index: 9, kind: output, shape index: {}]
  %s10 = sld [smem:[#allocation0]]
  $region97: #{encoder_forward.1} parent=0
    _
  %s12 = ssub.s32 1, %s10
  %s13 = scalar_select 0, %s12, %s10
  $region1: #{encoder_forward.1} parent=0
    #allocation5 [shape = 'u8[4096]{0}', space=vmem, size = 0x1000, scoped, tag = 'output window, operand 0']
    #allocation6 [shape = 's32[2]{0}', space=sflag, size = 0x8, scoped, tag = 'scoped memory for encoder_forward.1']
    %14 = vsyncpa [#allocation6], 0
    %s15 = scalar_lea.sflag [#allocation6], 1
    %16 = vsyncpa %s15, 0
    loop: start=0, step=1, limit=4
    $region2: #{encoder_forward.1} parent=1 // loop_pre_header
      _
    $region3: #{encoder_forward.1} parent=1 // loop_header
      %s18 = sphi 0, %s22
      %p19 = scmp.ge.s32.totalorder %s18, 4
      %s28 = sphi 0, %s30
      %s31 = sphi 0, %s28
      %s32 = sphi 0, %s31
      %s48 = sphi 0, %s32
      %s52 = sphi 0, %s52
      %s54 = sphi 0, %s52
      %s55 = sphi 0, %s54
      %s69 = sphi 0, %s55
      %s73 = sphi 0, %s73
      %s75 = sphi 0, %s73
      %s76 = sphi 0, %s75
      %s90 = sphi 0, %s76
      %s94 = sphi 0, %s94
      %s96 = sphi 0, %s94
      %s97 = sphi 0, %s96
      %s111 = sphi 0, %s97
      %s115 = sphi 0, %s115
      %s117 = sphi 0, %s115
      %s118 = sphi 0, %s117
      %s132 = sphi 0, %s118
      %s136 = sphi 0, %s136
      %s138 = sphi 0, %s136
      %s139 = sphi 0, %s138
      %s153 = sphi 0, %s139
      %s157 = sphi 0, %s157
      %s159 = sphi 0, %s157
      %s160 = sphi 0, %s159
      %s174 = sphi 0, %s160
      %s178 = sphi 0, %s178
      %s180 = sphi 0, %s178
      %s181 = sphi 0, %s180
      %s195 = sphi 0, %s181
      %s199 = sphi 0, %s199
      %s201 = sphi 0, %s199
      %s202 = sphi 0, %s201
      %s216 = sphi 0, %s202
      %s222 = sphi 0, %s224
      %s225 = sphi 0, %s222
      %s226 = sphi 0, %s225
      %s242 = sphi 0, %s226
    $region4: #{encoder_forward.1} parent=1 // loop_header_branch
      %21 = sbr.rel (%p19) target = $region8
    $region5: #{encoder_forward.1} parent=1 // loop_body
      %s23 = ssub.s32 %s18, 1
      %s24 = ssub.s32 %s18, 2
      %s25 = sadd.s32 %s18, 1
      %s26 = ssub.s32 %s18, %s25
      %p27 = scmp.eq.s32.totalorder %s26, 0
      %s29 = sadd.s32 %s28, 1
      %s30 = scalar_select %p27, %s28, %s29
      %p33 = pneg %p27
      %p34 = scmp.eq.s32.totalorder %s18, 1
      %p35 = por %p33, %p34
      %p36 = scmp.ne.s32.totalorder %s28, %s31
      %p37 = scmp.eq.s32.totalorder %s18, 0
      %p38 = por %p36, %p37
      %p39 = scmp.ne.s32.totalorder %s28, %s31
      %p40 = scmp.eq.s32.totalorder %s23, 1
      %p41 = por %p39, %p40
      %p42 = scmp.ne.s32.totalorder %s31, %s32
      %p43 = scmp.eq.s32.totalorder %s23, 0
      %p44 = por %p42, %p43
      %p45 = scmp.ne.s32.totalorder %s31, %s32
      %p46 = scmp.eq.s32.totalorder %s24, 1
      %p47 = por %p45, %p46
      %p49 = scmp.ne.s32.totalorder %s32, %s48
      %p50 = scmp.eq.s32.totalorder %s24, 0
      %p51 = por %p49, %p50
      %s53 = sadd.s32 %s52, 1
      %p56 = scmp.eq.s32.totalorder %s18, 1
      %p57 = scmp.ne.s32.totalorder %s52, %s54
      %p58 = scmp.eq.s32.totalorder %s18, 0
      %p59 = por %p57, %p58
      %p60 = scmp.ne.s32.totalorder %s52, %s54
      %p61 = scmp.eq.s32.totalorder %s23, 1
      %p62 = por %p60, %p61
      %p63 = scmp.ne.s32.totalorder %s54, %s55
      %p64 = scmp.eq.s32.totalorder %s23, 0
      %p65 = por %p63, %p64
      %p66 = scmp.ne.s32.totalorder %s54, %s55
      %p67 = scmp.eq.s32.totalorder %s24, 1
      %p68 = por %p66, %p67
      %p70 = scmp.ne.s32.totalorder %s55, %s69
      %p71 = scmp.eq.s32.totalorder %s24, 0
      %p72 = por %p70, %p71
      %s74 = sadd.s32 %s73, 1
      %p77 = scmp.eq.s32.totalorder %s18, 1
      %p78 = scmp.ne.s32.totalorder %s73, %s75
      %p79 = scmp.eq.s32.totalorder %s18, 0
      %p80 = por %p78, %p79
      %p81 = scmp.ne.s32.totalorder %s73, %s75
      %p82 = scmp.eq.s32.totalorder %s23, 1
      %p83 = por %p81, %p82
      %p84 = scmp.ne.s32.totalorder %s75, %s76
      %p85 = scmp.eq.s32.totalorder %s23, 0
      %p86 = por %p84, %p85
      %p87 = scmp.ne.s32.totalorder %s75, %s76
      %p88 = scmp.eq.s32.totalorder %s24, 1
      %p89 = por %p87, %p88
      %p91 = scmp.ne.s32.totalorder %s76, %s90
      %p92 = scmp.eq.s32.totalorder %s24, 0
      %p93 = por %p91, %p92
      %s95 = sadd.s32 %s94, 1
      %p98 = scmp.eq.s32.totalorder %s18, 1
      %p99 = scmp.ne.s32.totalorder %s94, %s96
      %p100 = scmp.eq.s32.totalorder %s18, 0
      %p101 = por %p99, %p100
      %p102 = scmp.ne.s32.totalorder %s94, %s96
      %p103 = scmp.eq.s32.totalorder %s23, 1
      %p104 = por %p102, %p103
      %p105 = scmp.ne.s32.totalorder %s96, %s97
      %p106 = scmp.eq.s32.totalorder %s23, 0
      %p107 = por %p105, %p106
      %p108 = scmp.ne.s32.totalorder %s96, %s97
      %p109 = scmp.eq.s32.totalorder %s24, 1
      %p110 = por %p108, %p109
      %p112 = scmp.ne.s32.totalorder %s97, %s111
      %p113 = scmp.eq.s32.totalorder %s24, 0
      %p114 = por %p112, %p113
      %s116 = sadd.s32 %s115, 1
      %p119 = scmp.eq.s32.totalorder %s18, 1
      %p120 = scmp.ne.s32.totalorder %s115, %s117
      %p121 = scmp.eq.s32.totalorder %s18, 0
      %p122 = por %p120, %p121
      %p123 = scmp.ne.s32.totalorder %s115, %s117
      %p124 = scmp.eq.s32.totalorder %s23, 1
      %p125 = por %p123, %p124
      %p126 = scmp.ne.s32.totalorder %s117, %s118
      %p127 = scmp.eq.s32.totalorder %s23, 0
      %p128 = por %p126, %p127
      %p129 = scmp.ne.s32.totalorder %s117, %s118
      %p130 = scmp.eq.s32.totalorder %s24, 1
      %p131 = por %p129, %p130
      %p133 = scmp.ne.s32.totalorder %s118, %s132
      %p134 = scmp.eq.s32.totalorder %s24, 0
      %p135 = por %p133, %p134
      %s137 = sadd.s32 %s136, 1
      %p140 = scmp.eq.s32.totalorder %s18, 1
      %p141 = scmp.ne.s32.totalorder %s136, %s138
      %p142 = scmp.eq.s32.totalorder %s18, 0
      %p143 = por %p141, %p142
      %p144 = scmp.ne.s32.totalorder %s136, %s138
      %p145 = scmp.eq.s32.totalorder %s23, 1
      %p146 = por %p144, %p145
      %p147 = scmp.ne.s32.totalorder %s138, %s139
      %p148 = scmp.eq.s32.totalorder %s23, 0
      %p149 = por %p147, %p148
      %p150 = scmp.ne.s32.totalorder %s138, %s139
      %p151 = scmp.eq.s32.totalorder %s24, 1
      %p152 = por %p150, %p151
      %p154 = scmp.ne.s32.totalorder %s139, %s153
      %p155 = scmp.eq.s32.totalorder %s24, 0
      %p156 = por %p154, %p155
      %s158 = sadd.s32 %s157, 1
      %p161 = scmp.eq.s32.totalorder %s18, 1
      %p162 = scmp.ne.s32.totalorder %s157, %s159
      %p163 = scmp.eq.s32.totalorder %s18, 0
      %p164 = por %p162, %p163
      %p165 = scmp.ne.s32.totalorder %s157, %s159
      %p166 = scmp.eq.s32.totalorder %s23, 1
      %p167 = por %p165, %p166
      %p168 = scmp.ne.s32.totalorder %s159, %s160
      %p169 = scmp.eq.s32.totalorder %s23, 0
      %p170 = por %p168, %p169
      %p171 = scmp.ne.s32.totalorder %s159, %s160
      %p172 = scmp.eq.s32.totalorder %s24, 1
      %p173 = por %p171, %p172
      %p175 = scmp.ne.s32.totalorder %s160, %s174
      %p176 = scmp.eq.s32.totalorder %s24, 0
      %p177 = por %p175, %p176
      %s179 = sadd.s32 %s178, 1
      %p182 = scmp.eq.s32.totalorder %s18, 1
      %p183 = scmp.ne.s32.totalorder %s178, %s180
      %p184 = scmp.eq.s32.totalorder %s18, 0
      %p185 = por %p183, %p184
      %p186 = scmp.ne.s32.totalorder %s178, %s180
      %p187 = scmp.eq.s32.totalorder %s23, 1
      %p188 = por %p186, %p187
      %p189 = scmp.ne.s32.totalorder %s180, %s181
      %p190 = scmp.eq.s32.totalorder %s23, 0
      %p191 = por %p189, %p190
      %p192 = scmp.ne.s32.totalorder %s180, %s181
      %p193 = scmp.eq.s32.totalorder %s24, 1
      %p194 = por %p192, %p193
      %p196 = scmp.ne.s32.totalorder %s181, %s195
      %p197 = scmp.eq.s32.totalorder %s24, 0
      %p198 = por %p196, %p197
      %s200 = sadd.s32 %s199, 1
      %p203 = scmp.eq.s32.totalorder %s18, 1
      %p204 = scmp.ne.s32.totalorder %s199, %s201
      %p205 = scmp.eq.s32.totalorder %s18, 0
      %p206 = por %p204, %p205
      %p207 = scmp.ne.s32.totalorder %s199, %s201
      %p208 = scmp.eq.s32.totalorder %s23, 1
      %p209 = por %p207, %p208
      %p210 = scmp.ne.s32.totalorder %s201, %s202
      %p211 = scmp.eq.s32.totalorder %s23, 0
      %p212 = por %p210, %p211
      %p213 = scmp.ne.s32.totalorder %s201, %s202
      %p214 = scmp.eq.s32.totalorder %s24, 1
      %p215 = por %p213, %p214
      %p217 = scmp.ne.s32.totalorder %s202, %s216
      %p218 = scmp.eq.s32.totalorder %s24, 0
      %p219 = por %p217, %p218
      %s220 = ssub.s32 %s18, %s25
      %p221 = scmp.eq.s32.totalorder %s220, 0
      %s223 = sadd.s32 %s222, 1
      %s224 = scalar_select %p221, %s222, %s223
      %p227 = pneg %p221
      %p228 = scmp.eq.s32.totalorder %s18, 1
      %p229 = por %p227, %p228
      %p230 = scmp.ne.s32.totalorder %s222, %s225
      %p231 = scmp.eq.s32.totalorder %s18, 0
      %p232 = por %p230, %p231
      %p233 = scmp.ne.s32.totalorder %s222, %s225
      %p234 = scmp.eq.s32.totalorder %s23, 1
      %p235 = por %p233, %p234
      %p236 = scmp.ne.s32.totalorder %s225, %s226
      %p237 = scmp.eq.s32.totalorder %s23, 0
      %p238 = por %p236, %p237
      %p239 = scmp.ne.s32.totalorder %s225, %s226
      %p240 = scmp.eq.s32.totalorder %s24, 1
      %p241 = por %p239, %p240
      %p243 = scmp.ne.s32.totalorder %s226, %s242
      %p244 = scmp.eq.s32.totalorder %s24, 0
      %p245 = por %p243, %p244
      %p246 = scmp.le.s32.totalorder 1, %s18
      %p247 = scmp.lt.s32.totalorder %s18, 3
      %p248 = pnand %p246, %p247
      %p249 = pneg %p248
      // Predicated region
      $region9: #{encoder_forward.1} parent=5 // pred_check
        _
      $region10: #{encoder_forward.1} parent=5 // pred_check_branch
        %251 = sbr.rel (%p248) target = $region12
      $region11: #{encoder_forward.1} parent=5 // pred_region
        %s252 = ssub.s32 %s18, 1
        // Predicated region
        $region13: #{encoder_forward.1} parent=11 // pred_check
          %p253 = pneg %p65
        $region14: #{encoder_forward.1} parent=11 // pred_check_branch
          %255 = sbr.rel (%p253) target = $region16
        $region15: #{encoder_forward.1} parent=11 // pred_region
          _
        $region16: #{encoder_forward.1} parent=11 // pred_fallthru
          _
        // Predicated region
        $region17: #{encoder_forward.1} parent=11 // pred_check
          %p256 = pneg %p86
        $region18: #{encoder_forward.1} parent=11 // pred_check_branch
          %258 = sbr.rel (%p256) target = $region20
        $region19: #{encoder_forward.1} parent=11 // pred_region
          _
        $region20: #{encoder_forward.1} parent=11 // pred_fallthru
          _
        // Predicated region
        $region21: #{encoder_forward.1} parent=11 // pred_check
          %p259 = pneg %p107
        $region22: #{encoder_forward.1} parent=11 // pred_check_branch
          %261 = sbr.rel (%p259) target = $region24
        $region23: #{encoder_forward.1} parent=11 // pred_region
          _
        $region24: #{encoder_forward.1} parent=11 // pred_fallthru
          _
        // Predicated region
        $region25: #{encoder_forward.1} parent=11 // pred_check
          %p262 = pneg %p128
        $region26: #{encoder_forward.1} parent=11 // pred_check_branch
          %264 = sbr.rel (%p262) target = $region28
        $region27: #{encoder_forward.1} parent=11 // pred_region
          _
        $region28: #{encoder_forward.1} parent=11 // pred_fallthru
          _
        // Predicated region
        $region29: #{encoder_forward.1} parent=11 // pred_check
          %p265 = pneg %p149
        $region30: #{encoder_forward.1} parent=11 // pred_check_branch
          %267 = sbr.rel (%p265) target = $region32
        $region31: #{encoder_forward.1} parent=11 // pred_region
          _
        $region32: #{encoder_forward.1} parent=11 // pred_fallthru
          _
        // Predicated region
        $region33: #{encoder_forward.1} parent=11 // pred_check
          %p268 = pneg %p170
        $region34: #{encoder_forward.1} parent=11 // pred_check_branch
          %270 = sbr.rel (%p268) target = $region36
        $region35: #{encoder_forward.1} parent=11 // pred_region
          _
        $region36: #{encoder_forward.1} parent=11 // pred_fallthru
          _
        // Predicated region
        $region37: #{encoder_forward.1} parent=11 // pred_check
          %p271 = pneg %p191
        $region38: #{encoder_forward.1} parent=11 // pred_check_branch
          %273 = sbr.rel (%p271) target = $region40
        $region39: #{encoder_forward.1} parent=11 // pred_region
          _
        $region40: #{encoder_forward.1} parent=11 // pred_fallthru
          _
        // Predicated region
        $region41: #{encoder_forward.1} parent=11 // pred_check
          %p274 = pneg %p212
        $region42: #{encoder_forward.1} parent=11 // pred_check_branch
          %276 = sbr.rel (%p274) target = $region44
        $region43: #{encoder_forward.1} parent=11 // pred_region
          _
        $region44: #{encoder_forward.1} parent=11 // pred_fallthru
          _
      $region12: #{encoder_forward.1} parent=5 // pred_fallthru
        _
      %p277 = scmp.lt.s32.totalorder %s18, 2
      // Predicated region
      $region45: #{encoder_forward.1} parent=5 // pred_check
        %p278 = pneg %p277
      $region46: #{encoder_forward.1} parent=5 // pred_check_branch
        %280 = sbr.rel (%p278) target = $region48
      $region47: #{encoder_forward.1} parent=5 // pred_region
        // Predicated region
        $region49: #{encoder_forward.1} parent=47 // pred_check
          %p281 = pneg %p38
        $region50: #{encoder_forward.1} parent=47 // pred_check_branch
          %283 = sbr.rel (%p281) target = $region52
        $region51: #{encoder_forward.1} parent=47 // pred_region
          %p284 = scmp.lt.s32.totalorder %s18, 1
          %s285 = scalar_select %p284, %s18, 1
          %s286 = smul.addr %s285, 32
          %s287 = smul.addr %s286, 8
          %s288 = scalar_lea.vmem %s0, %s287
        $region52: #{encoder_forward.1} parent=47 // pred_fallthru
          _
      $region48: #{encoder_forward.1} parent=5 // pred_fallthru
        _
      %p289 = scmp.le.s32.totalorder 1, %s18
      %p290 = scmp.lt.s32.totalorder %s18, 3
      %p291 = pnand %p289, %p290
      %p292 = pneg %p291
      // Predicated region
      $region53: #{encoder_forward.1} parent=5 // pred_check
        _
      $region54: #{encoder_forward.1} parent=5 // pred_check_branch
        %294 = sbr.rel (%p291) target = $region56
      $region55: #{encoder_forward.1} parent=5 // pred_region
        %s295 = ssub.s32 %s18, 1
        %p296 = scmp.lt.s32.totalorder %s23, 1
        %s297 = scalar_select %p296, %s23, 1
        %s298 = smul.addr %s297, 32
        %s299 = smul.addr %s298, 8
        %s300 = scalar_lea.vmem %s0, %s299
        %p301 = pneg %p44
        %p302 = pneg %p41
        %p303 = pneg %p65
        %p304 = pneg %p62
        %p305 = pneg %p86
        %p306 = pneg %p83
        %p307 = pneg %p107
        %p308 = pneg %p104
        %p309 = pneg %p128
        %p310 = pneg %p125
        %p311 = pneg %p149
        %p312 = pneg %p146
        %p313 = pneg %p170
        %p314 = pneg %p167
        %p315 = pneg %p191
        %p316 = pneg %p188
        %p317 = pneg %p212
        %p318 = pneg %p209
        %p319 = pneg %p238
        %p320 = pneg %p235
        %s321 = sand.u32 %s225, 1
        %s322 = scalar_lea.sflag [#allocation6], %s321
        %s323 = sand.u32 %s225, 1
        %s324 = smul.addr %s323, 4
        %s325 = scalar_lea.vmem [#allocation5], %s324
        %p326 = scmp.lt.s32.totalorder %s23, 1
        %s327 = scalar_select %p326, %s23, 1
        %s328 = smul.addr %s327, 32
        %s329 = smul.addr %s328, 8
        %s330 = scalar_lea.vmem %s0, %s329
        %v331 = vld [vmem:[%s2] sm:$0x1]
        %v332 = vld [vmem:[%s4] sm:$0x1]
        %v333 = vld [vmem:[%s6] sm:$0x1]
        %v334 = vld [vmem:[%s8] sm:$0x1]
        loop: start=0, step=1, limit=15
        $region57: #{encoder_forward.1} parent=55 // loop_pre_header
          _
        $region58: #{encoder_forward.1} parent=55 // loop_header
          %s336 = sphi 0, %s340
          %p337 = scmp.ge.s32.totalorder %s336, 15
        $region59: #{encoder_forward.1} parent=55 // loop_header_branch
          %339 = sbr.rel (%p337) target = $region63
        $region60: #{encoder_forward.1} parent=55 // loop_body
          %s341 = smul.u32 %s336, 16
          %s342 = scalar_lea.vmem %s330, %s341
          %v343 = vld [vmem:[%s342] sm:$0xff]
          %v344 = vld [vmem:[%s342 + $0x8] sm:$0x7f]
          %v345 = vld [vmem:[%s1] sm:$0xff]
          %v346 = vld [vmem:[%s1 + $0x8] sm:$0xff]
          %v347 = vld [vmem:[%s1 + $0x10] sm:$0xff]
          %v348 = vld [vmem:[%s1 + $0x18] sm:$0xff]
          %v349 = vld [vmem:[%s1 + $0x20] sm:$0xff]
          %v350 = vld [vmem:[%s1 + $0x28] sm:$0xff]
          %v351 = vld [vmem:[%s1 + $0x30] sm:$0xff]
          %v352 = vld [vmem:[%s1 + $0x38] sm:$0xff]
          %s353 = sadd.s32 %s341, 1
          %s354 = scalar_lea.vmem %s330, %s353
          %v355 = vld [vmem:[%s354] sm:$0xff]
          %v356 = vld [vmem:[%s354 + $0x8] sm:$0x7f]
          %s357 = scalar_lea.vmem %s1, 64
          %v358 = vld [vmem:[%s357] sm:$0xff]
          %v359 = vld [vmem:[%s357 + $0x8] sm:$0xff]
          %v360 = vld [vmem:[%s357 + $0x10] sm:$0xff]
          %v361 = vld [vmem:[%s357 + $0x18] sm:$0xff]
          %v362 = vld [vmem:[%s357 + $0x20] sm:$0xff]
          %v363 = vld [vmem:[%s357 + $0x28] sm:$0xff]
          %v364 = vld [vmem:[%s357 + $0x30] sm:$0xff]
          %v365 = vld [vmem:[%s357 + $0x38] sm:$0xff]
          %vm366 = vcmask 523264
          %v368 = vsel %vm366, %v355, 0
          %v371 = vsel %vm366, %v356, 0
          %373 = vmatpush.msra.mxu0 0.0
          %374 = vmatpush.msra.mxu0 0.0
          %375 = vmatpush.msra.mxu0 0.0
          %376 = vmatpush.msra.mxu0 0.0
          %377 = vmatpush.msra.mxu0 0.0
          %378 = vmatpush.msra.mxu0 0.0
          %379 = vmatpush.msra.mxu0 0.0
          %380 = vmatpush.msra.mxu0 0.0
          %381 = vmatpush.msra.mxu0 %v365
          %382 = vmatpush.msra.mxu0 %v364
          %383 = vmatpush.msra.mxu0 %v363
          %384 = vmatpush.msra.mxu0 %v362
          %385 = vmatpush.msra.mxu0 %v361
          %386 = vmatpush.msra.mxu0 %v360
          %387 = vmatpush.msra.mxu0 %v359
          %388 = vmatpush.msra.mxu0 %v358
          %389 = vmatmul.f32.gmra.mxu0 %v368
          %v390 = vpop.f32.mrf.mxu0
          %v391 = vadd.f32 0.0, %v390
          %392 = vmatmul.f32.gmra.mxu0 %v371
          %v393 = vpop.f32.mrf.mxu0
          %v394 = vadd.f32 0.0, %v393
          %395 = vdwg.mxu0
          %v397 = vsel %vm366, %v343, 0
          %v400 = vsel %vm366, %v344, 0
          %402 = vmatpush.msra.mxu0 0.0
          %403 = vmatpush.msra.mxu0 0.0
          %404 = vmatpush.msra.mxu0 0.0
          %405 = vmatpush.msra.mxu0 0.0
          %406 = vmatpush.msra.mxu0 0.0
          %407 = vmatpush.msra.mxu0 0.0
          %408 = vmatpush.msra.mxu0 0.0
          %409 = vmatpush.msra.mxu0 0.0
          %410 = vmatpush.msra.mxu0 %v352
          %411 = vmatpush.msra.mxu0 %v351
          %412 = vmatpush.msra.mxu0 %v350
          %413 = vmatpush.msra.mxu0 %v349
          %414 = vmatpush.msra.mxu0 %v348
          %415 = vmatpush.msra.mxu0 %v347
          %416 = vmatpush.msra.mxu0 %v346
          %417 = vmatpush.msra.mxu0 %v345
          %418 = vmatmul.f32.gmra.mxu0 %v397
          %v419 = vpop.f32.mrf.mxu0
          %v420 = vadd.f32 %v391, %v419
          %421 = vmatmul.f32.gmra.mxu0 %v400
          %v422 = vpop.f32.mrf.mxu0
          %v423 = vadd.f32 %v394, %v422
          %424 = vdwg.mxu0
          %s425 = sadd.s32 %s336, 1
          %s426 = smul.u32 %s425, 16
          %s427 = scalar_lea.vmem %s330, %s426
          %v428 = vld [vmem:[%s427] sm:$0xff]
          %v429 = vld [vmem:[%s427 + $0x8] sm:$0x7f]
          %s430 = scalar_lea.vmem %s1, 128
          %v431 = vld [vmem:[%s430] sm:$0xff]
          %v432 = vld [vmem:[%s430 + $0x8] sm:$0xff]
          %v433 = vld [vmem:[%s430 + $0x10] sm:$0xff]
          %v434 = vld [vmem:[%s430 + $0x18] sm:$0xff]
          %v435 = vld [vmem:[%s430 + $0x20] sm:$0xff]
          %v436 = vld [vmem:[%s430 + $0x28] sm:$0xff]
          %v437 = vld [vmem:[%s430 + $0x30] sm:$0xff]
          %v438 = vld [vmem:[%s430 + $0x38] sm:$0xff]
          %v440 = vsel %vm366, %v428, 0
          %v443 = vsel %vm366, %v429, 0
          %445 = vmatpush.msra.mxu0 0.0
          %446 = vmatpush.msra.mxu0 0.0
          %447 = vmatpush.msra.mxu0 0.0
          %448 = vmatpush.msra.mxu0 0.0
          %449 = vmatpush.msra.mxu0 0.0
          %450 = vmatpush.msra.mxu0 0.0
          %451 = vmatpush.msra.mxu0 0.0
          %452 = vmatpush.msra.mxu0 0.0
          %453 = vmatpush.msra.mxu0 %v438
          %454 = vmatpush.msra.mxu0 %v437
          %455 = vmatpush.msra.mxu0 %v436
          %456 = vmatpush.msra.mxu0 %v435
          %457 = vmatpush.msra.mxu0 %v434
          %458 = vmatpush.msra.mxu0 %v433
          %459 = vmatpush.msra.mxu0 %v432
          %460 = vmatpush.msra.mxu0 %v431
          %461 = vmatmul.f32.gmra.mxu0 %v440
          %v462 = vpop.f32.mrf.mxu0
          %v463 = vadd.f32 0.0, %v462
          %464 = vmatmul.f32.gmra.mxu0 %v443
          %v465 = vpop.f32.mrf.mxu0
          %v466 = vadd.f32 0.0, %v465
          %467 = vdwg.mxu0
          %v468 = vadd.f32 %v420, %v463
          %v469 = vadd.f32 %v423, %v466
          %s470 = sadd.s32 %s426, 1
          %s471 = scalar_lea.vmem %s330, %s470
          %v472 = vld [vmem:[%s471] sm:$0xff]
          %v473 = vld [vmem:[%s471 + $0x8] sm:$0x7f]
          %s474 = scalar_lea.vmem %s1, 192
          %v475 = vld [vmem:[%s474] sm:$0xff]
          %v476 = vld [vmem:[%s474 + $0x8] sm:$0xff]
          %v477 = vld [vmem:[%s474 + $0x10] sm:$0xff]
          %v478 = vld [vmem:[%s474 + $0x18] sm:$0xff]
          %v479 = vld [vmem:[%s474 + $0x20] sm:$0xff]
          %v480 = vld [vmem:[%s474 + $0x28] sm:$0xff]
          %v481 = vld [vmem:[%s474 + $0x30] sm:$0xff]
          %v482 = vld [vmem:[%s474 + $0x38] sm:$0xff]
          %v484 = vsel %vm366, %v472, 0
          %v487 = vsel %vm366, %v473, 0
          %489 = vmatpush.msra.mxu0 0.0
          %490 = vmatpush.msra.mxu0 0.0
          %491 = vmatpush.msra.mxu0 0.0
          %492 = vmatpush.msra.mxu0 0.0
          %493 = vmatpush.msra.mxu0 0.0
          %494 = vmatpush.msra.mxu0 0.0
          %495 = vmatpush.msra.mxu0 0.0
          %496 = vmatpush.msra.mxu0 0.0
          %497 = vmatpush.msra.mxu0 %v482
          %498 = vmatpush.msra.mxu0 %v481
          %499 = vmatpush.msra.mxu0 %v480
          %500 = vmatpush.msra.mxu0 %v479
          %501 = vmatpush.msra.mxu0 %v478
          %502 = vmatpush.msra.mxu0 %v477
          %503 = vmatpush.msra.mxu0 %v476
          %504 = vmatpush.msra.mxu0 %v475
          %505 = vmatmul.f32.gmra.mxu0 %v484
          %v506 = vpop.f32.mrf.mxu0
          %v507 = vadd.f32 0.0, %v506
          %508 = vmatmul.f32.gmra.mxu0 %v487
          %v509 = vpop.f32.mrf.mxu0
          %v510 = vadd.f32 0.0, %v509
          %511 = vdwg.mxu0
          %v512 = vadd.f32 %v468, %v507
          %v513 = vadd.f32 %v469, %v510
          %v515 = vperm.slane %v331, 0
          %v517 = vadd.f32 %v512, %v515
          %v518 = vadd.f32 %v513, %v515
          %v519 = vmax.f32 %v517, 0.0
          %v520 = vmax.f32 %v518, 0.0
          %s521 = smul.u32 %s336, 15
          %s522 = scalar_lea.vmem [#allocation2], %s521
          %vm523 = vcmask 261120
          %524 = vst.msk [vmem:[%s522] sm:$0xff] %vm523, %v519
          %vm525 = vcmask 260096
          %526 = vst.msk [vmem:[%s522 + $0x8] sm:$0x7f] %vm525, %v520
        $region61: #{encoder_forward.1} parent=55 // loop_footer
          %s340 = sadd.s32 1, %s336
        $region62: #{encoder_forward.1} parent=55 // loop_footer_branch
          %335 = sbr.rel target = $region58
        $region63: #{encoder_forward.1} parent=55 // loop_exit
          _
        %v527 = vlaneseq
        %v528 = vand.u32 %v527, 127
        %v529 = vlaneseq
        %v530 = vshrl.u32 %v529, 7
        %v531 = vmul.u32 %v530, 2
        %vm532 = vcmp.eq.s32.totalorder %v528, %v531
        %v533 = vsel %vm532, 1, 0
        %v534 = vcvt.s32.f32 %v533
        loop: start=0, step=1, limit=6
        $region64: #{encoder_forward.1} parent=55 // loop_pre_header
          _
        $region65: #{encoder_forward.1} parent=55 // loop_header
          %s536 = sphi 0, %s540
          %p537 = scmp.ge.s32.totalorder %s536, 6
        $region66: #{encoder_forward.1} parent=55 // loop_header_branch
          %539 = sbr.rel (%p537) target = $region70
        $region67: #{encoder_forward.1} parent=55 // loop_body
          %s541 = smul.u32 %s536, 30
          %s542 = scalar_lea.vmem [#allocation2], %s541
          %v543 = vld [vmem:[%s542] sm:$0xff]
          %v544 = vld [vmem:[%s542 + $0x8] sm:$0xf]
          %v545 = vld [vmem:[%s3] sm:$0xff]
          %v546 = vld [vmem:[%s3 + $0x8] sm:$0xff]
          %v547 = vld [vmem:[%s3 + $0x10] sm:$0xff]
          %v548 = vld [vmem:[%s3 + $0x18] sm:$0xff]
          %s549 = sadd.s32 %s541, 1
          %s550 = scalar_lea.vmem [#allocation2], %s549
          %v551 = vld [vmem:[%s550] sm:$0xff]
          %v552 = vld [vmem:[%s550 + $0x8] sm:$0xf]
          %s553 = scalar_lea.vmem %s3, 32
          %v554 = vld [vmem:[%s553] sm:$0xff]
          %v555 = vld [vmem:[%s553 + $0x8] sm:$0xff]
          %v556 = vld [vmem:[%s553 + $0x10] sm:$0xff]
          %v557 = vld [vmem:[%s553 + $0x18] sm:$0xff]
          %vm558 = vcmask 261120
          %v560 = vsel %vm558, %v551, 0
          %v563 = vsel %vm558, %v552, 0
          %565 = vmatpush.msra.mxu0 0.0
          %566 = vmatpush.msra.mxu0 0.0
          %567 = vmatpush.msra.mxu0 0.0
          %568 = vmatpush.msra.mxu0 0.0
          %569 = vmatpush.msra.mxu0 0.0
          %570 = vmatpush.msra.mxu0 0.0
          %571 = vmatpush.msra.mxu0 0.0
          %572 = vmatpush.msra.mxu0 0.0
          %573 = vmatpush.msra.mxu0 0.0
          %574 = vmatpush.msra.mxu0 0.0
          %575 = vmatpush.msra.mxu0 0.0
          %576 = vmatpush.msra.mxu0 0.0
          %577 = vmatpush.msra.mxu0 %v557
          %578 = vmatpush.msra.mxu0 %v556
          %579 = vmatpush.msra.mxu0 %v555
          %580 = vmatpush.msra.mxu0 %v554
          %581 = vmatmul.f32.gmra.mxu0 %v560
          %v582 = vpop.f32.mrf.mxu0
          %v583 = vadd.f32 0.0, %v582
          %584 = vmatmul.f32.gmra.mxu0 %v563
          %v585 = vpop.f32.mrf.mxu0
          %v586 = vadd.f32 0.0, %v585
          %587 = vdwg.mxu0
          %v589 = vsel %vm558, %v543, 0
          %v592 = vsel %vm558, %v544, 0
          %594 = vmatpush.msra.mxu0 0.0
          %595 = vmatpush.msra.mxu0 0.0
          %596 = vmatpush.msra.mxu0 0.0
          %597 = vmatpush.msra.mxu0 0.0
          %598 = vmatpush.msra.mxu0 0.0
          %599 = vmatpush.msra.mxu0 0.0
          %600 = vmatpush.msra.mxu0 0.0
          %601 = vmatpush.msra.mxu0 0.0
          %602 = vmatpush.msra.mxu0 0.0
          %603 = vmatpush.msra.mxu0 0.0
          %604 = vmatpush.msra.mxu0 0.0
          %605 = vmatpush.msra.mxu0 0.0
          %606 = vmatpush.msra.mxu0 %v548
          %607 = vmatpush.msra.mxu0 %v547
          %608 = vmatpush.msra.mxu0 %v546
          %609 = vmatpush.msra.mxu0 %v545
          %610 = vmatmul.f32.gmra.mxu0 %v589
          %v611 = vpop.f32.mrf.mxu0
          %v612 = vadd.f32 %v583, %v611
          %613 = vmatmul.f32.gmra.mxu0 %v592
          %v614 = vpop.f32.mrf.mxu0
          %v615 = vadd.f32 %v586, %v614
          %616 = vdwg.mxu0
          %s617 = sadd.s32 %s541, 2
          %s618 = scalar_lea.vmem [#allocation2], %s617
          %v619 = vld [vmem:[%s618] sm:$0xff]
          %v620 = vld [vmem:[%s618 + $0x8] sm:$0xf]
          %s621 = scalar_lea.vmem %s3, 64
          %v622 = vld [vmem:[%s621] sm:$0xff]
          %v623 = vld [vmem:[%s621 + $0x8] sm:$0xff]
          %v624 = vld [vmem:[%s621 + $0x10] sm:$0xff]
          %v625 = vld [vmem:[%s621 + $0x18] sm:$0xff]
          %v627 = vsel %vm558, %v619, 0
          %v630 = vsel %vm558, %v620, 0
          %632 = vmatpush.msra.mxu0 0.0
          %633 = vmatpush.msra.mxu0 0.0
          %634 = vmatpush.msra.mxu0 0.0
          %635 = vmatpush.msra.mxu0 0.0
          %636 = vmatpush.msra.mxu0 0.0
          %637 = vmatpush.msra.mxu0 0.0
          %638 = vmatpush.msra.mxu0 0.0
          %639 = vmatpush.msra.mxu0 0.0
          %640 = vmatpush.msra.mxu0 0.0
          %641 = vmatpush.msra.mxu0 0.0
          %642 = vmatpush.msra.mxu0 0.0
          %643 = vmatpush.msra.mxu0 0.0
          %644 = vmatpush.msra.mxu0 %v625
          %645 = vmatpush.msra.mxu0 %v624
          %646 = vmatpush.msra.mxu0 %v623
          %647 = vmatpush.msra.mxu0 %v622
          %648 = vmatmul.f32.gmra.mxu0 %v627
          %v649 = vpop.f32.mrf.mxu0
          %v650 = vadd.f32 0.0, %v649
          %651 = vmatmul.f32.gmra.mxu0 %v630
          %v652 = vpop.f32.mrf.mxu0
          %v653 = vadd.f32 0.0, %v652
          %654 = vdwg.mxu0
          %v655 = vadd.f32 %v612, %v650
          %v656 = vadd.f32 %v615, %v653
          %s657 = sadd.s32 %s541, 3
          %s658 = scalar_lea.vmem [#allocation2], %s657
          %v659 = vld [vmem:[%s658] sm:$0xff]
          %v660 = vld [vmem:[%s658 + $0x8] sm:$0xf]
          %s661 = scalar_lea.vmem %s3, 96
          %v662 = vld [vmem:[%s661] sm:$0xff]
          %v663 = vld [vmem:[%s661 + $0x8] sm:$0xff]
          %v664 = vld [vmem:[%s661 + $0x10] sm:$0xff]
          %v665 = vld [vmem:[%s661 + $0x18] sm:$0xff]
          %v667 = vsel %vm558, %v659, 0
          %v670 = vsel %vm558, %v660, 0
          %672 = vmatpush.msra.mxu0 0.0
          %673 = vmatpush.msra.mxu0 0.0
          %674 = vmatpush.msra.mxu0 0.0
          %675 = vmatpush.msra.mxu0 0.0
          %676 = vmatpush.msra.mxu0 0.0
          %677 = vmatpush.msra.mxu0 0.0
          %678 = vmatpush.msra.mxu0 0.0
          %679 = vmatpush.msra.mxu0 0.0
          %680 = vmatpush.msra.mxu0 0.0
          %681 = vmatpush.msra.mxu0 0.0
          %682 = vmatpush.msra.mxu0 0.0
          %683 = vmatpush.msra.mxu0 0.0
          %684 = vmatpush.msra.mxu0 %v665
          %685 = vmatpush.msra.mxu0 %v664
          %686 = vmatpush.msra.mxu0 %v663
          %687 = vmatpush.msra.mxu0 %v662
          %688 = vmatmul.f32.gmra.mxu0 %v667
          %v689 = vpop.f32.mrf.mxu0
          %v690 = vadd.f32 0.0, %v689
          %691 = vmatmul.f32.gmra.mxu0 %v670
          %v692 = vpop.f32.mrf.mxu0
          %v693 = vadd.f32 0.0, %v692
          %694 = vdwg.mxu0
          %v695 = vadd.f32 %v655, %v690
          %v696 = vadd.f32 %v656, %v693
          %s697 = smul.u32 %s536, 2
          %s698 = sadd.s32 %s697, 1
          %s699 = smul.u32 %s698, 15
          %s700 = scalar_lea.vmem [#allocation2], %s699
          %v701 = vld [vmem:[%s700] sm:$0xff]
          %v702 = vld [vmem:[%s700 + $0x8] sm:$0xf]
          %s703 = scalar_lea.vmem %s3, 128
          %v704 = vld [vmem:[%s703] sm:$0xff]
          %v705 = vld [vmem:[%s703 + $0x8] sm:$0xff]
          %v706 = vld [vmem:[%s703 + $0x10] sm:$0xff]
          %v707 = vld [vmem:[%s703 + $0x18] sm:$0xff]
          %v709 = vsel %vm558, %v701, 0
          %v712 = vsel %vm558, %v702, 0
          %714 = vmatpush.msra.mxu0 0.0
          %715 = vmatpush.msra.mxu0 0.0
          %716 = vmatpush.msra.mxu0 0.0
          %717 = vmatpush.msra.mxu0 0.0
          %718 = vmatpush.msra.mxu0 0.0
          %719 = vmatpush.msra.mxu0 0.0
          %720 = vmatpush.msra.mxu0 0.0
          %721 = vmatpush.msra.mxu0 0.0
          %722 = vmatpush.msra.mxu0 0.0
          %723 = vmatpush.msra.mxu0 0.0
          %724 = vmatpush.msra.mxu0 0.0
          %725 = vmatpush.msra.mxu0 0.0
          %726 = vmatpush.msra.mxu0 %v707
          %727 = vmatpush.msra.mxu0 %v706
          %728 = vmatpush.msra.mxu0 %v705
          %729 = vmatpush.msra.mxu0 %v704
          %730 = vmatmul.f32.gmra.mxu0 %v709
          %v731 = vpop.f32.mrf.mxu0
          %v732 = vadd.f32 0.0, %v731
          %733 = vmatmul.f32.gmra.mxu0 %v712
          %v734 = vpop.f32.mrf.mxu0
          %v735 = vadd.f32 0.0, %v734
          %736 = vdwg.mxu0
          %v737 = vadd.f32 %v695, %v732
          %v738 = vadd.f32 %v696, %v735
          %s739 = sadd.s32 %s699, 1
          %s740 = scalar_lea.vmem [#allocation2], %s739
          %v741 = vld [vmem:[%s740] sm:$0xff]
          %v742 = vld [vmem:[%s740 + $0x8] sm:$0xf]
          %s743 = scalar_lea.vmem %s3, 160
          %v744 = vld [vmem:[%s743] sm:$0xff]
          %v745 = vld [vmem:[%s743 + $0x8] sm:$0xff]
          %v746 = vld [vmem:[%s743 + $0x10] sm:$0xff]
          %v747 = vld [vmem:[%s743 + $0x18] sm:$0xff]
          %v749 = vsel %vm558, %v741, 0
          %v752 = vsel %vm558, %v742, 0
          %754 = vmatpush.msra.mxu0 0.0
          %755 = vmatpush.msra.mxu0 0.0
          %756 = vmatpush.msra.mxu0 0.0
          %757 = vmatpush.msra.mxu0 0.0
          %758 = vmatpush.msra.mxu0 0.0
          %759 = vmatpush.msra.mxu0 0.0
          %760 = vmatpush.msra.mxu0 0.0
          %761 = vmatpush.msra.mxu0 0.0
          %762 = vmatpush.msra.mxu0 0.0
          %763 = vmatpush.msra.mxu0 0.0
          %764 = vmatpush.msra.mxu0 0.0
          %765 = vmatpush.msra.mxu0 0.0
          %766 = vmatpush.msra.mxu0 %v747
          %767 = vmatpush.msra.mxu0 %v746
          %768 = vmatpush.msra.mxu0 %v745
          %769 = vmatpush.msra.mxu0 %v744
          %770 = vmatmul.f32.gmra.mxu0 %v749
          %v771 = vpop.f32.mrf.mxu0
          %v772 = vadd.f32 0.0, %v771
          %773 = vmatmul.f32.gmra.mxu0 %v752
          %v774 = vpop.f32.mrf.mxu0
          %v775 = vadd.f32 0.0, %v774
          %776 = vdwg.mxu0
          %v777 = vadd.f32 %v737, %v772
          %v778 = vadd.f32 %v738, %v775
          %s779 = sadd.s32 %s699, 2
          %s780 = scalar_lea.vmem [#allocation2], %s779
          %v781 = vld [vmem:[%s780] sm:$0xff]
          %v782 = vld [vmem:[%s780 + $0x8] sm:$0xf]
          %s783 = scalar_lea.vmem %s3, 192
          %v784 = vld [vmem:[%s783] sm:$0xff]
          %v785 = vld [vmem:[%s783 + $0x8] sm:$0xff]
          %v786 = vld [vmem:[%s783 + $0x10] sm:$0xff]
          %v787 = vld [vmem:[%s783 + $0x18] sm:$0xff]
          %v789 = vsel %vm558, %v781, 0
          %v792 = vsel %vm558, %v782, 0
          %794 = vmatpush.msra.mxu0 0.0
          %795 = vmatpush.msra.mxu0 0.0
          %796 = vmatpush.msra.mxu0 0.0
          %797 = vmatpush.msra.mxu0 0.0
          %798 = vmatpush.msra.mxu0 0.0
          %799 = vmatpush.msra.mxu0 0.0
          %800 = vmatpush.msra.mxu0 0.0
          %801 = vmatpush.msra.mxu0 0.0
          %802 = vmatpush.msra.mxu0 0.0
          %803 = vmatpush.msra.mxu0 0.0
          %804 = vmatpush.msra.mxu0 0.0
          %805 = vmatpush.msra.mxu0 0.0
          %806 = vmatpush.msra.mxu0 %v787
          %807 = vmatpush.msra.mxu0 %v786
          %808 = vmatpush.msra.mxu0 %v785
          %809 = vmatpush.msra.mxu0 %v784
          %810 = vmatmul.f32.gmra.mxu0 %v789
          %v811 = vpop.f32.mrf.mxu0
          %v812 = vadd.f32 0.0, %v811
          %813 = vmatmul.f32.gmra.mxu0 %v792
          %v814 = vpop.f32.mrf.mxu0
          %v815 = vadd.f32 0.0, %v814
          %816 = vdwg.mxu0
          %v817 = vadd.f32 %v777, %v812
          %v818 = vadd.f32 %v778, %v815
          %s819 = sadd.s32 %s699, 3
          %s820 = scalar_lea.vmem [#allocation2], %s819
          %v821 = vld [vmem:[%s820] sm:$0xff]
          %v822 = vld [vmem:[%s820 + $0x8] sm:$0xf]
          %s823 = scalar_lea.vmem %s3, 224
          %v824 = vld [vmem:[%s823] sm:$0xff]
          %v825 = vld [vmem:[%s823 + $0x8] sm:$0xff]
          %v826 = vld [vmem:[%s823 + $0x10] sm:$0xff]
          %v827 = vld [vmem:[%s823 + $0x18] sm:$0xff]
          %v829 = vsel %vm558, %v821, 0
          %v832 = vsel %vm558, %v822, 0
          %834 = vmatpush.msra.mxu0 0.0
          %835 = vmatpush.msra.mxu0 0.0
          %836 = vmatpush.msra.mxu0 0.0
          %837 = vmatpush.msra.mxu0 0.0
          %838 = vmatpush.msra.mxu0 0.0
          %839 = vmatpush.msra.mxu0 0.0
          %840 = vmatpush.msra.mxu0 0.0
          %841 = vmatpush.msra.mxu0 0.0
          %842 = vmatpush.msra.mxu0 0.0
          %843 = vmatpush.msra.mxu0 0.0
          %844 = vmatpush.msra.mxu0 0.0
          %845 = vmatpush.msra.mxu0 0.0
          %846 = vmatpush.msra.mxu0 %v827
          %847 = vmatpush.msra.mxu0 %v826
          %848 = vmatpush.msra.mxu0 %v825
          %849 = vmatpush.msra.mxu0 %v824
          %850 = vmatmul.f32.gmra.mxu0 %v829
          %v851 = vpop.f32.mrf.mxu0
          %v852 = vadd.f32 0.0, %v851
          %853 = vmatmul.f32.gmra.mxu0 %v832
          %v854 = vpop.f32.mrf.mxu0
          %v855 = vadd.f32 0.0, %v854
          %856 = vdwg.mxu0
          %v857 = vadd.f32 %v817, %v852
          %v858 = vadd.f32 %v818, %v855
          %s859 = sadd.s32 %s697, 2
          %s860 = smul.u32 %s859, 15
          %s861 = scalar_lea.vmem [#allocation2], %s860
          %v862 = vld [vmem:[%s861] sm:$0xff]
          %v863 = vld [vmem:[%s861 + $0x8] sm:$0xf]
          %s864 = scalar_lea.vmem %s3, 256
          %v865 = vld [vmem:[%s864] sm:$0xff]
          %v866 = vld [vmem:[%s864 + $0x8] sm:$0xff]
          %v867 = vld [vmem:[%s864 + $0x10] sm:$0xff]
          %v868 = vld [vmem:[%s864 + $0x18] sm:$0xff]
          %v870 = vsel %vm558, %v862, 0
          %v873 = vsel %vm558, %v863, 0
          %875 = vmatpush.msra.mxu0 0.0
          %876 = vmatpush.msra.mxu0 0.0
          %877 = vmatpush.msra.mxu0 0.0
          %878 = vmatpush.msra.mxu0 0.0
          %879 = vmatpush.msra.mxu0 0.0
          %880 = vmatpush.msra.mxu0 0.0
          %881 = vmatpush.msra.mxu0 0.0
          %882 = vmatpush.msra.mxu0 0.0
          %883 = vmatpush.msra.mxu0 0.0
          %884 = vmatpush.msra.mxu0 0.0
          %885 = vmatpush.msra.mxu0 0.0
          %886 = vmatpush.msra.mxu0 0.0
          %887 = vmatpush.msra.mxu0 %v868
          %888 = vmatpush.msra.mxu0 %v867
          %889 = vmatpush.msra.mxu0 %v866
          %890 = vmatpush.msra.mxu0 %v865
          %891 = vmatmul.f32.gmra.mxu0 %v870
          %v892 = vpop.f32.mrf.mxu0
          %v893 = vadd.f32 0.0, %v892
          %894 = vmatmul.f32.gmra.mxu0 %v873
          %v895 = vpop.f32.mrf.mxu0
          %v896 = vadd.f32 0.0, %v895
          %897 = vdwg.mxu0
          %v898 = vadd.f32 %v857, %v893
          %v899 = vadd.f32 %v858, %v896
          %s900 = sadd.s32 %s860, 1
          %s901 = scalar_lea.vmem [#allocation2], %s900
          %v902 = vld [vmem:[%s901] sm:$0xff]
          %v903 = vld [vmem:[%s901 + $0x8] sm:$0xf]
          %s904 = scalar_lea.vmem %s3, 288
          %v905 = vld [vmem:[%s904] sm:$0xff]
          %v906 = vld [vmem:[%s904 + $0x8] sm:$0xff]
          %v907 = vld [vmem:[%s904 + $0x10] sm:$0xff]
          %v908 = vld [vmem:[%s904 + $0x18] sm:$0xff]
          %v910 = vsel %vm558, %v902, 0
          %v913 = vsel %vm558, %v903, 0
          %915 = vmatpush.msra.mxu0 0.0
          %916 = vmatpush.msra.mxu0 0.0
          %917 = vmatpush.msra.mxu0 0.0
          %918 = vmatpush.msra.mxu0 0.0
          %919 = vmatpush.msra.mxu0 0.0
          %920 = vmatpush.msra.mxu0 0.0
          %921 = vmatpush.msra.mxu0 0.0
          %922 = vmatpush.msra.mxu0 0.0
          %923 = vmatpush.msra.mxu0 0.0
          %924 = vmatpush.msra.mxu0 0.0
          %925 = vmatpush.msra.mxu0 0.0
          %926 = vmatpush.msra.mxu0 0.0
          %927 = vmatpush.msra.mxu0 %v908
          %928 = vmatpush.msra.mxu0 %v907
          %929 = vmatpush.msra.mxu0 %v906
          %930 = vmatpush.msra.mxu0 %v905
          %931 = vmatmul.f32.gmra.mxu0 %v910
          %v932 = vpop.f32.mrf.mxu0
          %v933 = vadd.f32 0.0, %v932
          %934 = vmatmul.f32.gmra.mxu0 %v913
          %v935 = vpop.f32.mrf.mxu0
          %v936 = vadd.f32 0.0, %v935
          %937 = vdwg.mxu0
          %v938 = vadd.f32 %v898, %v933
          %v939 = vadd.f32 %v899, %v936
          %s940 = sadd.s32 %s860, 2
          %s941 = scalar_lea.vmem [#allocation2], %s940
          %v942 = vld [vmem:[%s941] sm:$0xff]
          %v943 = vld [vmem:[%s941 + $0x8] sm:$0xf]
          %s944 = scalar_lea.vmem %s3, 320
          %v945 = vld [vmem:[%s944] sm:$0xff]
          %v946 = vld [vmem:[%s944 + $0x8] sm:$0xff]
          %v947 = vld [vmem:[%s944 + $0x10] sm:$0xff]
          %v948 = vld [vmem:[%s944 + $0x18] sm:$0xff]
          %v950 = vsel %vm558, %v942, 0
          %v953 = vsel %vm558, %v943, 0
          %955 = vmatpush.msra.mxu0 0.0
          %956 = vmatpush.msra.mxu0 0.0
          %957 = vmatpush.msra.mxu0 0.0
          %958 = vmatpush.msra.mxu0 0.0
          %959 = vmatpush.msra.mxu0 0.0
          %960 = vmatpush.msra.mxu0 0.0
          %961 = vmatpush.msra.mxu0 0.0
          %962 = vmatpush.msra.mxu0 0.0
          %963 = vmatpush.msra.mxu0 0.0
          %964 = vmatpush.msra.mxu0 0.0
          %965 = vmatpush.msra.mxu0 0.0
          %966 = vmatpush.msra.mxu0 0.0
          %967 = vmatpush.msra.mxu0 %v948
          %968 = vmatpush.msra.mxu0 %v947
          %969 = vmatpush.msra.mxu0 %v946
          %970 = vmatpush.msra.mxu0 %v945
          %971 = vmatmul.f32.gmra.mxu0 %v950
          %v972 = vpop.f32.mrf.mxu0
          %v973 = vadd.f32 0.0, %v972
          %974 = vmatmul.f32.gmra.mxu0 %v953
          %v975 = vpop.f32.mrf.mxu0
          %v976 = vadd.f32 0.0, %v975
          %977 = vdwg.mxu0
          %v978 = vadd.f32 %v938, %v973
          %v979 = vadd.f32 %v939, %v976
          %s980 = sadd.s32 %s860, 3
          %s981 = scalar_lea.vmem [#allocation2], %s980
          %v982 = vld [vmem:[%s981] sm:$0xff]
          %v983 = vld [vmem:[%s981 + $0x8] sm:$0xf]
          %s984 = scalar_lea.vmem %s3, 352
          %v985 = vld [vmem:[%s984] sm:$0xff]
          %v986 = vld [vmem:[%s984 + $0x8] sm:$0xff]
          %v987 = vld [vmem:[%s984 + $0x10] sm:$0xff]
          %v988 = vld [vmem:[%s984 + $0x18] sm:$0xff]
          %v990 = vsel %vm558, %v982, 0
          %v993 = vsel %vm558, %v983, 0
          %995 = vmatpush.msra.mxu0 0.0
          %996 = vmatpush.msra.mxu0 0.0
          %997 = vmatpush.msra.mxu0 0.0
          %998 = vmatpush.msra.mxu0 0.0
          %999 = vmatpush.msra.mxu0 0.0
          %1000 = vmatpush.msra.mxu0 0.0
          %1001 = vmatpush.msra.mxu0 0.0
          %1002 = vmatpush.msra.mxu0 0.0
          %1003 = vmatpush.msra.mxu0 0.0
          %1004 = vmatpush.msra.mxu0 0.0
          %1005 = vmatpush.msra.mxu0 0.0
          %1006 = vmatpush.msra.mxu0 0.0
          %1007 = vmatpush.msra.mxu0 %v988
          %1008 = vmatpush.msra.mxu0 %v987
          %1009 = vmatpush.msra.mxu0 %v986
          %1010 = vmatpush.msra.mxu0 %v985
          %1011 = vmatmul.f32.gmra.mxu0 %v990
          %v1012 = vpop.f32.mrf.mxu0
          %v1013 = vadd.f32 0.0, %v1012
          %1014 = vmatmul.f32.gmra.mxu0 %v993
          %v1015 = vpop.f32.mrf.mxu0
          %v1016 = vadd.f32 0.0, %v1015
          %1017 = vdwg.mxu0
          %v1018 = vadd.f32 %v978, %v1013
          %v1019 = vadd.f32 %v979, %v1016
          %s1020 = sadd.s32 %s697, 3
          %s1021 = smul.u32 %s1020, 15
          %s1022 = scalar_lea.vmem [#allocation2], %s1021
          %v1023 = vld [vmem:[%s1022] sm:$0xff]
          %v1024 = vld [vmem:[%s1022 + $0x8] sm:$0xf]
          %s1025 = scalar_lea.vmem %s3, 384
          %v1026 = vld [vmem:[%s1025] sm:$0xff]
          %v1027 = vld [vmem:[%s1025 + $0x8] sm:$0xff]
          %v1028 = vld [vmem:[%s1025 + $0x10] sm:$0xff]
          %v1029 = vld [vmem:[%s1025 + $0x18] sm:$0xff]
          %v1031 = vsel %vm558, %v1023, 0
          %v1034 = vsel %vm558, %v1024, 0
          %1036 = vmatpush.msra.mxu0 0.0
          %1037 = vmatpush.msra.mxu0 0.0
          %1038 = vmatpush.msra.mxu0 0.0
          %1039 = vmatpush.msra.mxu0 0.0
          %1040 = vmatpush.msra.mxu0 0.0
          %1041 = vmatpush.msra.mxu0 0.0
          %1042 = vmatpush.msra.mxu0 0.0
          %1043 = vmatpush.msra.mxu0 0.0
          %1044 = vmatpush.msra.mxu0 0.0
          %1045 = vmatpush.msra.mxu0 0.0
          %1046 = vmatpush.msra.mxu0 0.0
          %1047 = vmatpush.msra.mxu0 0.0
          %1048 = vmatpush.msra.mxu0 %v1029
          %1049 = vmatpush.msra.mxu0 %v1028
          %1050 = vmatpush.msra.mxu0 %v1027
          %1051 = vmatpush.msra.mxu0 %v1026
          %1052 = vmatmul.f32.gmra.mxu0 %v1031
          %v1053 = vpop.f32.mrf.mxu0
          %v1054 = vadd.f32 0.0, %v1053
          %1055 = vmatmul.f32.gmra.mxu0 %v1034
          %v1056 = vpop.f32.mrf.mxu0
          %v1057 = vadd.f32 0.0, %v1056
          %1058 = vdwg.mxu0
          %v1059 = vadd.f32 %v1018, %v1054
          %v1060 = vadd.f32 %v1019, %v1057
          %s1061 = sadd.s32 %s1021, 1
          %s1062 = scalar_lea.vmem [#allocation2], %s1061
          %v1063 = vld [vmem:[%s1062] sm:$0xff]
          %v1064 = vld [vmem:[%s1062 + $0x8] sm:$0xf]
          %s1065 = scalar_lea.vmem %s3, 416
          %v1066 = vld [vmem:[%s1065] sm:$0xff]
          %v1067 = vld [vmem:[%s1065 + $0x8] sm:$0xff]
          %v1068 = vld [vmem:[%s1065 + $0x10] sm:$0xff]
          %v1069 = vld [vmem:[%s1065 + $0x18] sm:$0xff]
          %v1071 = vsel %vm558, %v1063, 0
          %v1074 = vsel %vm558, %v1064, 0
          %1076 = vmatpush.msra.mxu0 0.0
          %1077 = vmatpush.msra.mxu0 0.0
          %1078 = vmatpush.msra.mxu0 0.0
          %1079 = vmatpush.msra.mxu0 0.0
          %1080 = vmatpush.msra.mxu0 0.0
          %1081 = vmatpush.msra.mxu0 0.0
          %1082 = vmatpush.msra.mxu0 0.0
          %1083 = vmatpush.msra.mxu0 0.0
          %1084 = vmatpush.msra.mxu0 0.0
          %1085 = vmatpush.msra.mxu0 0.0
          %1086 = vmatpush.msra.mxu0 0.0
          %1087 = vmatpush.msra.mxu0 0.0
          %1088 = vmatpush.msra.mxu0 %v1069
          %1089 = vmatpush.msra.mxu0 %v1068
          %1090 = vmatpush.msra.mxu0 %v1067
          %1091 = vmatpush.msra.mxu0 %v1066
          %1092 = vmatmul.f32.gmra.mxu0 %v1071
          %v1093 = vpop.f32.mrf.mxu0
          %v1094 = vadd.f32 0.0, %v1093
          %1095 = vmatmul.f32.gmra.mxu0 %v1074
          %v1096 = vpop.f32.mrf.mxu0
          %v1097 = vadd.f32 0.0, %v1096
          %1098 = vdwg.mxu0
          %v1099 = vadd.f32 %v1059, %v1094
          %v1100 = vadd.f32 %v1060, %v1097
          %s1101 = sadd.s32 %s1021, 2
          %s1102 = scalar_lea.vmem [#allocation2], %s1101
          %v1103 = vld [vmem:[%s1102] sm:$0xff]
          %v1104 = vld [vmem:[%s1102 + $0x8] sm:$0xf]
          %s1105 = scalar_lea.vmem %s3, 448
          %v1106 = vld [vmem:[%s1105] sm:$0xff]
          %v1107 = vld [vmem:[%s1105 + $0x8] sm:$0xff]
          %v1108 = vld [vmem:[%s1105 + $0x10] sm:$0xff]
          %v1109 = vld [vmem:[%s1105 + $0x18] sm:$0xff]
          %v1111 = vsel %vm558, %v1103, 0
          %v1114 = vsel %vm558, %v1104, 0
          %1116 = vmatpush.msra.mxu0 0.0
          %1117 = vmatpush.msra.mxu0 0.0
          %1118 = vmatpush.msra.mxu0 0.0
          %1119 = vmatpush.msra.mxu0 0.0
          %1120 = vmatpush.msra.mxu0 0.0
          %1121 = vmatpush.msra.mxu0 0.0
          %1122 = vmatpush.msra.mxu0 0.0
          %1123 = vmatpush.msra.mxu0 0.0
          %1124 = vmatpush.msra.mxu0 0.0
          %1125 = vmatpush.msra.mxu0 0.0
          %1126 = vmatpush.msra.mxu0 0.0
          %1127 = vmatpush.msra.mxu0 0.0
          %1128 = vmatpush.msra.mxu0 %v1109
          %1129 = vmatpush.msra.mxu0 %v1108
          %1130 = vmatpush.msra.mxu0 %v1107
          %1131 = vmatpush.msra.mxu0 %v1106
          %1132 = vmatmul.f32.gmra.mxu0 %v1111
          %v1133 = vpop.f32.mrf.mxu0
          %v1134 = vadd.f32 0.0, %v1133
          %1135 = vmatmul.f32.gmra.mxu0 %v1114
          %v1136 = vpop.f32.mrf.mxu0
          %v1137 = vadd.f32 0.0, %v1136
          %1138 = vdwg.mxu0
          %v1139 = vadd.f32 %v1099, %v1134
          %v1140 = vadd.f32 %v1100, %v1137
          %s1141 = sadd.s32 %s1021, 3
          %s1142 = scalar_lea.vmem [#allocation2], %s1141
          %v1143 = vld [vmem:[%s1142] sm:$0xff]
          %v1144 = vld [vmem:[%s1142 + $0x8] sm:$0xf]
          %s1145 = scalar_lea.vmem %s3, 480
          %v1146 = vld [vmem:[%s1145] sm:$0xff]
          %v1147 = vld [vmem:[%s1145 + $0x8] sm:$0xff]
          %v1148 = vld [vmem:[%s1145 + $0x10] sm:$0xff]
          %v1149 = vld [vmem:[%s1145 + $0x18] sm:$0xff]
          %v1151 = vsel %vm558, %v1143, 0
          %v1154 = vsel %vm558, %v1144, 0
          %1156 = vmatpush.msra.mxu0 0.0
          %1157 = vmatpush.msra.mxu0 0.0
          %1158 = vmatpush.msra.mxu0 0.0
          %1159 = vmatpush.msra.mxu0 0.0
          %1160 = vmatpush.msra.mxu0 0.0
          %1161 = vmatpush.msra.mxu0 0.0
          %1162 = vmatpush.msra.mxu0 0.0
          %1163 = vmatpush.msra.mxu0 0.0
          %1164 = vmatpush.msra.mxu0 0.0
          %1165 = vmatpush.msra.mxu0 0.0
          %1166 = vmatpush.msra.mxu0 0.0
          %1167 = vmatpush.msra.mxu0 0.0
          %1168 = vmatpush.msra.mxu0 %v1149
          %1169 = vmatpush.msra.mxu0 %v1148
          %1170 = vmatpush.msra.mxu0 %v1147
          %1171 = vmatpush.msra.mxu0 %v1146
          %1172 = vmatmul.f32.gmra.mxu0 %v1151
          %v1173 = vpop.f32.mrf.mxu0
          %v1174 = vadd.f32 0.0, %v1173
          %1175 = vmatmul.f32.gmra.mxu0 %v1154
          %v1176 = vpop.f32.mrf.mxu0
          %v1177 = vadd.f32 0.0, %v1176
          %1178 = vdwg.mxu0
          %v1179 = vadd.f32 %v1139, %v1174
          %v1180 = vadd.f32 %v1140, %v1177
          %v1182 = vperm.slane %v332, 0
          %vm1184 = vcmask 97280
          %v1186 = vsel %vm1184, %v534, 0
          %vm1188 = vcmask 1043456
          %v1190 = vsel %vm1188, %v1180, 0
          %1192 = vmatpush.msra.mxu0 0.0
          %1193 = vmatpush.msra.mxu0 0.0
          %1194 = vmatpush.msra.mxu0 0.0
          %1195 = vmatpush.msra.mxu0 0.0
          %1196 = vmatpush.msra.mxu0 0.0
          %1197 = vmatpush.msra.mxu0 0.0
          %1198 = vmatpush.msra.mxu0 0.0
          %1199 = vmatpush.msra.mxu0 0.0
          %1200 = vmatpush.msra.mxu0 0.0
          %1201 = vmatpush.msra.mxu0 0.0
          %1202 = vmatpush.msra.mxu0 0.0
          %1203 = vmatpush.msra.mxu0 0.0
          %1204 = vmatpush.msra.mxu0 0.0
          %1205 = vmatpush.msra.mxu0 0.0
          %1206 = vmatpush.msra.mxu0 %v1190
          %1207 = vmatpush.msra.mxu0 %v1179
          %1208 = vmatmul.f32.gmra.mxu0 %v1186
          %v1209 = vpop.f32.mrf.mxu0
          %v1210 = vadd.f32 %v1182, %v1209
          %1211 = vdwg.mxu0
          %v1212 = vmax.f32 %v1210, 0.0
          %s1213 = smul.u32 %s536, 6
          %s1214 = scalar_lea.vmem [#allocation3], %s1213
          %vm1215 = vcmask 521216
          %1216 = vst.msk [vmem:[%s1214] sm:$0x3f] %vm1215, %v1212
        $region68: #{encoder_forward.1} parent=55 // loop_footer
          %s540 = sadd.s32 1, %s536
        $region69: #{encoder_forward.1} parent=55 // loop_footer_branch
          %535 = sbr.rel target = $region65
        $region70: #{encoder_forward.1} parent=55 // loop_exit
          _
        loop: start=0, step=1, limit=4
        $region71: #{encoder_forward.1} parent=55 // loop_pre_header
          _
        $region72: #{encoder_forward.1} parent=55 // loop_header
          %s1218 = sphi 0, %s1222
          %p1219 = scmp.ge.s32.totalorder %s1218, 4
        $region73: #{encoder_forward.1} parent=55 // loop_header_branch
          %1221 = sbr.rel (%p1219) target = $region77
        $region74: #{encoder_forward.1} parent=55 // loop_body
          %s1223 = smul.u32 %s1218, 6
          %s1224 = scalar_lea.vmem [#allocation3], %s1223
          %v1225 = vld [vmem:[%s1224] sm:$0xf]
          %v1226 = vld [vmem:[%s5] sm:$0xff]
          %v1227 = vld [vmem:[%s5 + $0x8] sm:$0xff]
          %v1228 = vld [vmem:[%s5 + $0x10] sm:$0xff]
          %v1229 = vld [vmem:[%s5 + $0x18] sm:$0xff]
          %v1230 = vld [vmem:[%s5 + $0x20] sm:$0xff]
          %v1231 = vld [vmem:[%s5 + $0x28] sm:$0xff]
          %v1232 = vld [vmem:[%s5 + $0x30] sm:$0xff]
          %v1233 = vld [vmem:[%s5 + $0x38] sm:$0xff]
          %s1234 = sadd.s32 %s1223, 1
          %s1235 = scalar_lea.vmem [#allocation3], %s1234
          %v1236 = vld [vmem:[%s1235] sm:$0xf]
          %s1237 = scalar_lea.vmem %s5, 64
          %v1238 = vld [vmem:[%s1237] sm:$0xff]
          %v1239 = vld [vmem:[%s1237 + $0x8] sm:$0xff]
          %v1240 = vld [vmem:[%s1237 + $0x10] sm:$0xff]
          %v1241 = vld [vmem:[%s1237 + $0x18] sm:$0xff]
          %v1242 = vld [vmem:[%s1237 + $0x20] sm:$0xff]
          %v1243 = vld [vmem:[%s1237 + $0x28] sm:$0xff]
          %v1244 = vld [vmem:[%s1237 + $0x30] sm:$0xff]
          %v1245 = vld [vmem:[%s1237 + $0x38] sm:$0xff]
          %vm1246 = vcmask 523264
          %v1248 = vsel %vm1246, %v1236, 0
          %1250 = vmatpush.msra.mxu0 0.0
          %1251 = vmatpush.msra.mxu0 0.0
          %1252 = vmatpush.msra.mxu0 0.0
          %1253 = vmatpush.msra.mxu0 0.0
          %1254 = vmatpush.msra.mxu0 0.0
          %1255 = vmatpush.msra.mxu0 0.0
          %1256 = vmatpush.msra.mxu0 0.0
          %1257 = vmatpush.msra.mxu0 0.0
          %1258 = vmatpush.msra.mxu0 %v1245
          %1259 = vmatpush.msra.mxu0 %v1244
          %1260 = vmatpush.msra.mxu0 %v1243
          %1261 = vmatpush.msra.mxu0 %v1242
          %1262 = vmatpush.msra.mxu0 %v1241
          %1263 = vmatpush.msra.mxu0 %v1240
          %1264 = vmatpush.msra.mxu0 %v1239
          %1265 = vmatpush.msra.mxu0 %v1238
          %1266 = vmatmul.f32.gmra.mxu0 %v1248
          %v1267 = vpop.f32.mrf.mxu0
          %v1268 = vadd.f32 0.0, %v1267
          %1269 = vdwg.mxu0
          %v1271 = vsel %vm1246, %v1225, 0
          %1273 = vmatpush.msra.mxu0 0.0
          %1274 = vmatpush.msra.mxu0 0.0
          %1275 = vmatpush.msra.mxu0 0.0
          %1276 = vmatpush.msra.mxu0 0.0
          %1277 = vmatpush.msra.mxu0 0.0
          %1278 = vmatpush.msra.mxu0 0.0
          %1279 = vmatpush.msra.mxu0 0.0
          %1280 = vmatpush.msra.mxu0 0.0
          %1281 = vmatpush.msra.mxu0 %v1233
          %1282 = vmatpush.msra.mxu0 %v1232
          %1283 = vmatpush.msra.mxu0 %v1231
          %1284 = vmatpush.msra.mxu0 %v1230
          %1285 = vmatpush.msra.mxu0 %v1229
          %1286 = vmatpush.msra.mxu0 %v1228
          %1287 = vmatpush.msra.mxu0 %v1227
          %1288 = vmatpush.msra.mxu0 %v1226
          %1289 = vmatmul.f32.gmra.mxu0 %v1271
          %v1290 = vpop.f32.mrf.mxu0
          %v1291 = vadd.f32 %v1268, %v1290
          %1292 = vdwg.mxu0
          %s1293 = sadd.s32 %s1223, 2
          %s1294 = scalar_lea.vmem [#allocation3], %s1293
          %v1295 = vld [vmem:[%s1294] sm:$0xf]
          %s1296 = scalar_lea.vmem %s5, 128
          %v1297 = vld [vmem:[%s1296] sm:$0xff]
          %v1298 = vld [vmem:[%s1296 + $0x8] sm:$0xff]
          %v1299 = vld [vmem:[%s1296 + $0x10] sm:$0xff]
          %v1300 = vld [vmem:[%s1296 + $0x18] sm:$0xff]
          %v1301 = vld [vmem:[%s1296 + $0x20] sm:$0xff]
          %v1302 = vld [vmem:[%s1296 + $0x28] sm:$0xff]
          %v1303 = vld [vmem:[%s1296 + $0x30] sm:$0xff]
          %v1304 = vld [vmem:[%s1296 + $0x38] sm:$0xff]
          %v1306 = vsel %vm1246, %v1295, 0
          %1308 = vmatpush.msra.mxu0 0.0
          %1309 = vmatpush.msra.mxu0 0.0
          %1310 = vmatpush.msra.mxu0 0.0
          %1311 = vmatpush.msra.mxu0 0.0
          %1312 = vmatpush.msra.mxu0 0.0
          %1313 = vmatpush.msra.mxu0 0.0
          %1314 = vmatpush.msra.mxu0 0.0
          %1315 = vmatpush.msra.mxu0 0.0
          %1316 = vmatpush.msra.mxu0 %v1304
          %1317 = vmatpush.msra.mxu0 %v1303
          %1318 = vmatpush.msra.mxu0 %v1302
          %1319 = vmatpush.msra.mxu0 %v1301
          %1320 = vmatpush.msra.mxu0 %v1300
          %1321 = vmatpush.msra.mxu0 %v1299
          %1322 = vmatpush.msra.mxu0 %v1298
          %1323 = vmatpush.msra.mxu0 %v1297
          %1324 = vmatmul.f32.gmra.mxu0 %v1306
          %v1325 = vpop.f32.mrf.mxu0
          %v1326 = vadd.f32 0.0, %v1325
          %1327 = vdwg.mxu0
          %v1328 = vadd.f32 %v1291, %v1326
          %s1329 = sadd.s32 %s1218, 1
          %s1330 = smul.u32 %s1329, 6
          %s1331 = scalar_lea.vmem [#allocation3], %s1330
          %v1332 = vld [vmem:[%s1331] sm:$0xf]
          %s1333 = scalar_lea.vmem %s5, 192
          %v1334 = vld [vmem:[%s1333] sm:$0xff]
          %v1335 = vld [vmem:[%s1333 + $0x8] sm:$0xff]
          %v1336 = vld [vmem:[%s1333 + $0x10] sm:$0xff]
          %v1337 = vld [vmem:[%s1333 + $0x18] sm:$0xff]
          %v1338 = vld [vmem:[%s1333 + $0x20] sm:$0xff]
          %v1339 = vld [vmem:[%s1333 + $0x28] sm:$0xff]
          %v1340 = vld [vmem:[%s1333 + $0x30] sm:$0xff]
          %v1341 = vld [vmem:[%s1333 + $0x38] sm:$0xff]
          %v1343 = vsel %vm1246, %v1332, 0
          %1345 = vmatpush.msra.mxu0 0.0
          %1346 = vmatpush.msra.mxu0 0.0
          %1347 = vmatpush.msra.mxu0 0.0
          %1348 = vmatpush.msra.mxu0 0.0
          %1349 = vmatpush.msra.mxu0 0.0
          %1350 = vmatpush.msra.mxu0 0.0
          %1351 = vmatpush.msra.mxu0 0.0
          %1352 = vmatpush.msra.mxu0 0.0
          %1353 = vmatpush.msra.mxu0 %v1341
          %1354 = vmatpush.msra.mxu0 %v1340
          %1355 = vmatpush.msra.mxu0 %v1339
          %1356 = vmatpush.msra.mxu0 %v1338
          %1357 = vmatpush.msra.mxu0 %v1337
          %1358 = vmatpush.msra.mxu0 %v1336
          %1359 = vmatpush.msra.mxu0 %v1335
          %1360 = vmatpush.msra.mxu0 %v1334
          %1361 = vmatmul.f32.gmra.mxu0 %v1343
          %v1362 = vpop.f32.mrf.mxu0
          %v1363 = vadd.f32 0.0, %v1362
          %1364 = vdwg.mxu0
          %v1365 = vadd.f32 %v1328, %v1363
          %s1366 = sadd.s32 %s1330, 1
          %s1367 = scalar_lea.vmem [#allocation3], %s1366
          %v1368 = vld [vmem:[%s1367] sm:$0xf]
          %s1369 = scalar_lea.vmem %s5, 256
          %v1370 = vld [vmem:[%s1369] sm:$0xff]
          %v1371 = vld [vmem:[%s1369 + $0x8] sm:$0xff]
          %v1372 = vld [vmem:[%s1369 + $0x10] sm:$0xff]
          %v1373 = vld [vmem:[%s1369 + $0x18] sm:$0xff]
          %v1374 = vld [vmem:[%s1369 + $0x20] sm:$0xff]
          %v1375 = vld [vmem:[%s1369 + $0x28] sm:$0xff]
          %v1376 = vld [vmem:[%s1369 + $0x30] sm:$0xff]
          %v1377 = vld [vmem:[%s1369 + $0x38] sm:$0xff]
          %v1379 = vsel %vm1246, %v1368, 0
          %1381 = vmatpush.msra.mxu0 0.0
          %1382 = vmatpush.msra.mxu0 0.0
          %1383 = vmatpush.msra.mxu0 0.0
          %1384 = vmatpush.msra.mxu0 0.0
          %1385 = vmatpush.msra.mxu0 0.0
          %1386 = vmatpush.msra.mxu0 0.0
          %1387 = vmatpush.msra.mxu0 0.0
          %1388 = vmatpush.msra.mxu0 0.0
          %1389 = vmatpush.msra.mxu0 %v1377
          %1390 = vmatpush.msra.mxu0 %v1376
          %1391 = vmatpush.msra.mxu0 %v1375
          %1392 = vmatpush.msra.mxu0 %v1374
          %1393 = vmatpush.msra.mxu0 %v1373
          %1394 = vmatpush.msra.mxu0 %v1372
          %1395 = vmatpush.msra.mxu0 %v1371
          %1396 = vmatpush.msra.mxu0 %v1370
          %1397 = vmatmul.f32.gmra.mxu0 %v1379
          %v1398 = vpop.f32.mrf.mxu0
          %v1399 = vadd.f32 0.0, %v1398
          %1400 = vdwg.mxu0
          %v1401 = vadd.f32 %v1365, %v1399
          %s1402 = sadd.s32 %s1330, 2
          %s1403 = scalar_lea.vmem [#allocation3], %s1402
          %v1404 = vld [vmem:[%s1403] sm:$0xf]
          %s1405 = scalar_lea.vmem %s5, 320
          %v1406 = vld [vmem:[%s1405] sm:$0xff]
          %v1407 = vld [vmem:[%s1405 + $0x8] sm:$0xff]
          %v1408 = vld [vmem:[%s1405 + $0x10] sm:$0xff]
          %v1409 = vld [vmem:[%s1405 + $0x18] sm:$0xff]
          %v1410 = vld [vmem:[%s1405 + $0x20] sm:$0xff]
          %v1411 = vld [vmem:[%s1405 + $0x28] sm:$0xff]
          %v1412 = vld [vmem:[%s1405 + $0x30] sm:$0xff]
          %v1413 = vld [vmem:[%s1405 + $0x38] sm:$0xff]
          %v1415 = vsel %vm1246, %v1404, 0
          %1417 = vmatpush.msra.mxu0 0.0
          %1418 = vmatpush.msra.mxu0 0.0
          %1419 = vmatpush.msra.mxu0 0.0
          %1420 = vmatpush.msra.mxu0 0.0
          %1421 = vmatpush.msra.mxu0 0.0
          %1422 = vmatpush.msra.mxu0 0.0
          %1423 = vmatpush.msra.mxu0 0.0
          %1424 = vmatpush.msra.mxu0 0.0
          %1425 = vmatpush.msra.mxu0 %v1413
          %1426 = vmatpush.msra.mxu0 %v1412
          %1427 = vmatpush.msra.mxu0 %v1411
          %1428 = vmatpush.msra.mxu0 %v1410
          %1429 = vmatpush.msra.mxu0 %v1409
          %1430 = vmatpush.msra.mxu0 %v1408
          %1431 = vmatpush.msra.mxu0 %v1407
          %1432 = vmatpush.msra.mxu0 %v1406
          %1433 = vmatmul.f32.gmra.mxu0 %v1415
          %v1434 = vpop.f32.mrf.mxu0
          %v1435 = vadd.f32 0.0, %v1434
          %1436 = vdwg.mxu0
          %v1437 = vadd.f32 %v1401, %v1435
          %s1438 = sadd.s32 %s1218, 2
          %s1439 = smul.u32 %s1438, 6
          %s1440 = scalar_lea.vmem [#allocation3], %s1439
          %v1441 = vld [vmem:[%s1440] sm:$0xf]
          %s1442 = scalar_lea.vmem %s5, 384
          %v1443 = vld [vmem:[%s1442] sm:$0xff]
          %v1444 = vld [vmem:[%s1442 + $0x8] sm:$0xff]
          %v1445 = vld [vmem:[%s1442 + $0x10] sm:$0xff]
          %v1446 = vld [vmem:[%s1442 + $0x18] sm:$0xff]
          %v1447 = vld [vmem:[%s1442 + $0x20] sm:$0xff]
          %v1448 = vld [vmem:[%s1442 + $0x28] sm:$0xff]
          %v1449 = vld [vmem:[%s1442 + $0x30] sm:$0xff]
          %v1450 = vld [vmem:[%s1442 + $0x38] sm:$0xff]
          %v1452 = vsel %vm1246, %v1441, 0
          %1454 = vmatpush.msra.mxu0 0.0
          %1455 = vmatpush.msra.mxu0 0.0
          %1456 = vmatpush.msra.mxu0 0.0
          %1457 = vmatpush.msra.mxu0 0.0
          %1458 = vmatpush.msra.mxu0 0.0
          %1459 = vmatpush.msra.mxu0 0.0
          %1460 = vmatpush.msra.mxu0 0.0
          %1461 = vmatpush.msra.mxu0 0.0
          %1462 = vmatpush.msra.mxu0 %v1450
          %1463 = vmatpush.msra.mxu0 %v1449
          %1464 = vmatpush.msra.mxu0 %v1448
          %1465 = vmatpush.msra.mxu0 %v1447
          %1466 = vmatpush.msra.mxu0 %v1446
          %1467 = vmatpush.msra.mxu0 %v1445
          %1468 = vmatpush.msra.mxu0 %v1444
          %1469 = vmatpush.msra.mxu0 %v1443
          %1470 = vmatmul.f32.gmra.mxu0 %v1452
          %v1471 = vpop.f32.mrf.mxu0
          %v1472 = vadd.f32 0.0, %v1471
          %1473 = vdwg.mxu0
          %v1474 = vadd.f32 %v1437, %v1472
          %s1475 = sadd.s32 %s1439, 1
          %s1476 = scalar_lea.vmem [#allocation3], %s1475
          %v1477 = vld [vmem:[%s1476] sm:$0xf]
          %s1478 = scalar_lea.vmem %s5, 448
          %v1479 = vld [vmem:[%s1478] sm:$0xff]
          %v1480 = vld [vmem:[%s1478 + $0x8] sm:$0xff]
          %v1481 = vld [vmem:[%s1478 + $0x10] sm:$0xff]
          %v1482 = vld [vmem:[%s1478 + $0x18] sm:$0xff]
          %v1483 = vld [vmem:[%s1478 + $0x20] sm:$0xff]
          %v1484 = vld [vmem:[%s1478 + $0x28] sm:$0xff]
          %v1485 = vld [vmem:[%s1478 + $0x30] sm:$0xff]
          %v1486 = vld [vmem:[%s1478 + $0x38] sm:$0xff]
          %v1488 = vsel %vm1246, %v1477, 0
          %1490 = vmatpush.msra.mxu0 0.0
          %1491 = vmatpush.msra.mxu0 0.0
          %1492 = vmatpush.msra.mxu0 0.0
          %1493 = vmatpush.msra.mxu0 0.0
          %1494 = vmatpush.msra.mxu0 0.0
          %1495 = vmatpush.msra.mxu0 0.0
          %1496 = vmatpush.msra.mxu0 0.0
          %1497 = vmatpush.msra.mxu0 0.0
          %1498 = vmatpush.msra.mxu0 %v1486
          %1499 = vmatpush.msra.mxu0 %v1485
          %1500 = vmatpush.msra.mxu0 %v1484
          %1501 = vmatpush.msra.mxu0 %v1483
          %1502 = vmatpush.msra.mxu0 %v1482
          %1503 = vmatpush.msra.mxu0 %v1481
          %1504 = vmatpush.msra.mxu0 %v1480
          %1505 = vmatpush.msra.mxu0 %v1479
          %1506 = vmatmul.f32.gmra.mxu0 %v1488
          %v1507 = vpop.f32.mrf.mxu0
          %v1508 = vadd.f32 0.0, %v1507
          %1509 = vdwg.mxu0
          %v1510 = vadd.f32 %v1474, %v1508
          %s1511 = sadd.s32 %s1439, 2
          %s1512 = scalar_lea.vmem [#allocation3], %s1511
          %v1513 = vld [vmem:[%s1512] sm:$0xf]
          %s1514 = scalar_lea.vmem %s5, 512
          %v1515 = vld [vmem:[%s1514] sm:$0xff]
          %v1516 = vld [vmem:[%s1514 + $0x8] sm:$0xff]
          %v1517 = vld [vmem:[%s1514 + $0x10] sm:$0xff]
          %v1518 = vld [vmem:[%s1514 + $0x18] sm:$0xff]
          %v1519 = vld [vmem:[%s1514 + $0x20] sm:$0xff]
          %v1520 = vld [vmem:[%s1514 + $0x28] sm:$0xff]
          %v1521 = vld [vmem:[%s1514 + $0x30] sm:$0xff]
          %v1522 = vld [vmem:[%s1514 + $0x38] sm:$0xff]
          %v1524 = vsel %vm1246, %v1513, 0
          %1526 = vmatpush.msra.mxu0 0.0
          %1527 = vmatpush.msra.mxu0 0.0
          %1528 = vmatpush.msra.mxu0 0.0
          %1529 = vmatpush.msra.mxu0 0.0
          %1530 = vmatpush.msra.mxu0 0.0
          %1531 = vmatpush.msra.mxu0 0.0
          %1532 = vmatpush.msra.mxu0 0.0
          %1533 = vmatpush.msra.mxu0 0.0
          %1534 = vmatpush.msra.mxu0 %v1522
          %1535 = vmatpush.msra.mxu0 %v1521
          %1536 = vmatpush.msra.mxu0 %v1520
          %1537 = vmatpush.msra.mxu0 %v1519
          %1538 = vmatpush.msra.mxu0 %v1518
          %1539 = vmatpush.msra.mxu0 %v1517
          %1540 = vmatpush.msra.mxu0 %v1516
          %1541 = vmatpush.msra.mxu0 %v1515
          %1542 = vmatmul.f32.gmra.mxu0 %v1524
          %v1543 = vpop.f32.mrf.mxu0
          %v1544 = vadd.f32 0.0, %v1543
          %1545 = vdwg.mxu0
          %v1546 = vadd.f32 %v1510, %v1544
          %v1548 = vperm.slane %v333, 0
          %v1550 = vadd.f32 %v1546, %v1548
          %v1551 = vmax.f32 %v1550, 0.0
          %s1552 = smul.u32 %s1218, 4
          %s1553 = scalar_lea.vmem [#allocation4], %s1552
          %vm1554 = vcmask 519168
          %1555 = vst.msk [vmem:[%s1553] sm:$0xf] %vm1554, %v1551
        $region75: #{encoder_forward.1} parent=55 // loop_footer
          %s1222 = sadd.s32 1, %s1218
        $region76: #{encoder_forward.1} parent=55 // loop_footer_branch
          %1217 = sbr.rel target = $region72
        $region77: #{encoder_forward.1} parent=55 // loop_exit
          _
        loop: start=0, step=1, limit=2
        $region78: #{encoder_forward.1} parent=55 // loop_pre_header
          _
        $region79: #{encoder_forward.1} parent=55 // loop_header
          %s1557 = sphi 0, %s1561
          %p1558 = scmp.ge.s32.totalorder %s1557, 2
        $region80: #{encoder_forward.1} parent=55 // loop_header_branch
          %1560 = sbr.rel (%p1558) target = $region84
        $region81: #{encoder_forward.1} parent=55 // loop_body
          %s1562 = smul.u32 %s1557, 4
          %s1563 = scalar_lea.vmem [#allocation4], %s1562
          %v1564 = vld [vmem:[%s1563] sm:$0x3]
          %v1565 = vld [vmem:[%s7] sm:$0xff]
          %v1566 = vld [vmem:[%s7 + $0x8] sm:$0xff]
          %v1567 = vld [vmem:[%s7 + $0x10] sm:$0xff]
          %v1568 = vld [vmem:[%s7 + $0x18] sm:$0xff]
          %v1569 = vld [vmem:[%s7 + $0x20] sm:$0xff]
          %v1570 = vld [vmem:[%s7 + $0x28] sm:$0xff]
          %v1571 = vld [vmem:[%s7 + $0x30] sm:$0xff]
          %v1572 = vld [vmem:[%s7 + $0x38] sm:$0xff]
          %s1573 = sadd.s32 %s1562, 1
          %s1574 = scalar_lea.vmem [#allocation4], %s1573
          %v1575 = vld [vmem:[%s1574] sm:$0x3]
          %s1576 = scalar_lea.vmem %s7, 64
          %v1577 = vld [vmem:[%s1576] sm:$0xff]
          %v1578 = vld [vmem:[%s1576 + $0x8] sm:$0xff]
          %v1579 = vld [vmem:[%s1576 + $0x10] sm:$0xff]
          %v1580 = vld [vmem:[%s1576 + $0x18] sm:$0xff]
          %v1581 = vld [vmem:[%s1576 + $0x20] sm:$0xff]
          %v1582 = vld [vmem:[%s1576 + $0x28] sm:$0xff]
          %v1583 = vld [vmem:[%s1576 + $0x30] sm:$0xff]
          %v1584 = vld [vmem:[%s1576 + $0x38] sm:$0xff]
          %vm1585 = vcmask 523264
          %v1587 = vsel %vm1585, %v1575, 0
          %1589 = vmatpush.msra.mxu0 0.0
          %1590 = vmatpush.msra.mxu0 0.0
          %1591 = vmatpush.msra.mxu0 0.0
          %1592 = vmatpush.msra.mxu0 0.0
          %1593 = vmatpush.msra.mxu0 0.0
          %1594 = vmatpush.msra.mxu0 0.0
          %1595 = vmatpush.msra.mxu0 0.0
          %1596 = vmatpush.msra.mxu0 0.0
          %1597 = vmatpush.msra.mxu0 %v1584
          %1598 = vmatpush.msra.mxu0 %v1583
          %1599 = vmatpush.msra.mxu0 %v1582
          %1600 = vmatpush.msra.mxu0 %v1581
          %1601 = vmatpush.msra.mxu0 %v1580
          %1602 = vmatpush.msra.mxu0 %v1579
          %1603 = vmatpush.msra.mxu0 %v1578
          %1604 = vmatpush.msra.mxu0 %v1577
          %1605 = vmatmul.f32.gmra.mxu0 %v1587
          %v1606 = vpop.f32.mrf.mxu0
          %v1607 = vadd.f32 0.0, %v1606
          %1608 = vdwg.mxu0
          %v1610 = vsel %vm1585, %v1564, 0
          %1612 = vmatpush.msra.mxu0 0.0
          %1613 = vmatpush.msra.mxu0 0.0
          %1614 = vmatpush.msra.mxu0 0.0
          %1615 = vmatpush.msra.mxu0 0.0
          %1616 = vmatpush.msra.mxu0 0.0
          %1617 = vmatpush.msra.mxu0 0.0
          %1618 = vmatpush.msra.mxu0 0.0
          %1619 = vmatpush.msra.mxu0 0.0
          %1620 = vmatpush.msra.mxu0 %v1572
          %1621 = vmatpush.msra.mxu0 %v1571
          %1622 = vmatpush.msra.mxu0 %v1570
          %1623 = vmatpush.msra.mxu0 %v1569
          %1624 = vmatpush.msra.mxu0 %v1568
          %1625 = vmatpush.msra.mxu0 %v1567
          %1626 = vmatpush.msra.mxu0 %v1566
          %1627 = vmatpush.msra.mxu0 %v1565
          %1628 = vmatmul.f32.gmra.mxu0 %v1610
          %v1629 = vpop.f32.mrf.mxu0
          %v1630 = vadd.f32 %v1607, %v1629
          %1631 = vdwg.mxu0
          %s1632 = sadd.s32 %s1562, 2
          %s1633 = scalar_lea.vmem [#allocation4], %s1632
          %v1634 = vld [vmem:[%s1633] sm:$0x3]
          %s1635 = scalar_lea.vmem %s7, 128
          %v1636 = vld [vmem:[%s1635] sm:$0xff]
          %v1637 = vld [vmem:[%s1635 + $0x8] sm:$0xff]
          %v1638 = vld [vmem:[%s1635 + $0x10] sm:$0xff]
          %v1639 = vld [vmem:[%s1635 + $0x18] sm:$0xff]
          %v1640 = vld [vmem:[%s1635 + $0x20] sm:$0xff]
          %v1641 = vld [vmem:[%s1635 + $0x28] sm:$0xff]
          %v1642 = vld [vmem:[%s1635 + $0x30] sm:$0xff]
          %v1643 = vld [vmem:[%s1635 + $0x38] sm:$0xff]
          %v1645 = vsel %vm1585, %v1634, 0
          %1647 = vmatpush.msra.mxu0 0.0
          %1648 = vmatpush.msra.mxu0 0.0
          %1649 = vmatpush.msra.mxu0 0.0
          %1650 = vmatpush.msra.mxu0 0.0
          %1651 = vmatpush.msra.mxu0 0.0
          %1652 = vmatpush.msra.mxu0 0.0
          %1653 = vmatpush.msra.mxu0 0.0
          %1654 = vmatpush.msra.mxu0 0.0
          %1655 = vmatpush.msra.mxu0 %v1643
          %1656 = vmatpush.msra.mxu0 %v1642
          %1657 = vmatpush.msra.mxu0 %v1641
          %1658 = vmatpush.msra.mxu0 %v1640
          %1659 = vmatpush.msra.mxu0 %v1639
          %1660 = vmatpush.msra.mxu0 %v1638
          %1661 = vmatpush.msra.mxu0 %v1637
          %1662 = vmatpush.msra.mxu0 %v1636
          %1663 = vmatmul.f32.gmra.mxu0 %v1645
          %v1664 = vpop.f32.mrf.mxu0
          %v1665 = vadd.f32 0.0, %v1664
          %1666 = vdwg.mxu0
          %v1667 = vadd.f32 %v1630, %v1665
          %s1668 = sadd.s32 %s1557, 1
          %s1669 = smul.u32 %s1668, 4
          %s1670 = scalar_lea.vmem [#allocation4], %s1669
          %v1671 = vld [vmem:[%s1670] sm:$0x3]
          %s1672 = scalar_lea.vmem %s7, 192
          %v1673 = vld [vmem:[%s1672] sm:$0xff]
          %v1674 = vld [vmem:[%s1672 + $0x8] sm:$0xff]
          %v1675 = vld [vmem:[%s1672 + $0x10] sm:$0xff]
          %v1676 = vld [vmem:[%s1672 + $0x18] sm:$0xff]
          %v1677 = vld [vmem:[%s1672 + $0x20] sm:$0xff]
          %v1678 = vld [vmem:[%s1672 + $0x28] sm:$0xff]
          %v1679 = vld [vmem:[%s1672 + $0x30] sm:$0xff]
          %v1680 = vld [vmem:[%s1672 + $0x38] sm:$0xff]
          %v1682 = vsel %vm1585, %v1671, 0
          %1684 = vmatpush.msra.mxu0 0.0
          %1685 = vmatpush.msra.mxu0 0.0
          %1686 = vmatpush.msra.mxu0 0.0
          %1687 = vmatpush.msra.mxu0 0.0
          %1688 = vmatpush.msra.mxu0 0.0
          %1689 = vmatpush.msra.mxu0 0.0
          %1690 = vmatpush.msra.mxu0 0.0
          %1691 = vmatpush.msra.mxu0 0.0
          %1692 = vmatpush.msra.mxu0 %v1680
          %1693 = vmatpush.msra.mxu0 %v1679
          %1694 = vmatpush.msra.mxu0 %v1678
          %1695 = vmatpush.msra.mxu0 %v1677
          %1696 = vmatpush.msra.mxu0 %v1676
          %1697 = vmatpush.msra.mxu0 %v1675
          %1698 = vmatpush.msra.mxu0 %v1674
          %1699 = vmatpush.msra.mxu0 %v1673
          %1700 = vmatmul.f32.gmra.mxu0 %v1682
          %v1701 = vpop.f32.mrf.mxu0
          %v1702 = vadd.f32 0.0, %v1701
          %1703 = vdwg.mxu0
          %v1704 = vadd.f32 %v1667, %v1702
          %s1705 = sadd.s32 %s1669, 1
          %s1706 = scalar_lea.vmem [#allocation4], %s1705
          %v1707 = vld [vmem:[%s1706] sm:$0x3]
          %s1708 = scalar_lea.vmem %s7, 256
          %v1709 = vld [vmem:[%s1708] sm:$0xff]
          %v1710 = vld [vmem:[%s1708 + $0x8] sm:$0xff]
          %v1711 = vld [vmem:[%s1708 + $0x10] sm:$0xff]
          %v1712 = vld [vmem:[%s1708 + $0x18] sm:$0xff]
          %v1713 = vld [vmem:[%s1708 + $0x20] sm:$0xff]
          %v1714 = vld [vmem:[%s1708 + $0x28] sm:$0xff]
          %v1715 = vld [vmem:[%s1708 + $0x30] sm:$0xff]
          %v1716 = vld [vmem:[%s1708 + $0x38] sm:$0xff]
          %v1718 = vsel %vm1585, %v1707, 0
          %1720 = vmatpush.msra.mxu0 0.0
          %1721 = vmatpush.msra.mxu0 0.0
          %1722 = vmatpush.msra.mxu0 0.0
          %1723 = vmatpush.msra.mxu0 0.0
          %1724 = vmatpush.msra.mxu0 0.0
          %1725 = vmatpush.msra.mxu0 0.0
          %1726 = vmatpush.msra.mxu0 0.0
          %1727 = vmatpush.msra.mxu0 0.0
          %1728 = vmatpush.msra.mxu0 %v1716
          %1729 = vmatpush.msra.mxu0 %v1715
          %1730 = vmatpush.msra.mxu0 %v1714
          %1731 = vmatpush.msra.mxu0 %v1713
          %1732 = vmatpush.msra.mxu0 %v1712
          %1733 = vmatpush.msra.mxu0 %v1711
          %1734 = vmatpush.msra.mxu0 %v1710
          %1735 = vmatpush.msra.mxu0 %v1709
          %1736 = vmatmul.f32.gmra.mxu0 %v1718
          %v1737 = vpop.f32.mrf.mxu0
          %v1738 = vadd.f32 0.0, %v1737
          %1739 = vdwg.mxu0
          %v1740 = vadd.f32 %v1704, %v1738
          %s1741 = sadd.s32 %s1669, 2
          %s1742 = scalar_lea.vmem [#allocation4], %s1741
          %v1743 = vld [vmem:[%s1742] sm:$0x3]
          %s1744 = scalar_lea.vmem %s7, 320
          %v1745 = vld [vmem:[%s1744] sm:$0xff]
          %v1746 = vld [vmem:[%s1744 + $0x8] sm:$0xff]
          %v1747 = vld [vmem:[%s1744 + $0x10] sm:$0xff]
          %v1748 = vld [vmem:[%s1744 + $0x18] sm:$0xff]
          %v1749 = vld [vmem:[%s1744 + $0x20] sm:$0xff]
          %v1750 = vld [vmem:[%s1744 + $0x28] sm:$0xff]
          %v1751 = vld [vmem:[%s1744 + $0x30] sm:$0xff]
          %v1752 = vld [vmem:[%s1744 + $0x38] sm:$0xff]
          %v1754 = vsel %vm1585, %v1743, 0
          %1756 = vmatpush.msra.mxu0 0.0
          %1757 = vmatpush.msra.mxu0 0.0
          %1758 = vmatpush.msra.mxu0 0.0
          %1759 = vmatpush.msra.mxu0 0.0
          %1760 = vmatpush.msra.mxu0 0.0
          %1761 = vmatpush.msra.mxu0 0.0
          %1762 = vmatpush.msra.mxu0 0.0
          %1763 = vmatpush.msra.mxu0 0.0
          %1764 = vmatpush.msra.mxu0 %v1752
          %1765 = vmatpush.msra.mxu0 %v1751
          %1766 = vmatpush.msra.mxu0 %v1750
          %1767 = vmatpush.msra.mxu0 %v1749
          %1768 = vmatpush.msra.mxu0 %v1748
          %1769 = vmatpush.msra.mxu0 %v1747
          %1770 = vmatpush.msra.mxu0 %v1746
          %1771 = vmatpush.msra.mxu0 %v1745
          %1772 = vmatmul.f32.gmra.mxu0 %v1754
          %v1773 = vpop.f32.mrf.mxu0
          %v1774 = vadd.f32 0.0, %v1773
          %1775 = vdwg.mxu0
          %v1776 = vadd.f32 %v1740, %v1774
          %s1777 = sadd.s32 %s1557, 2
          %s1778 = smul.u32 %s1777, 4
          %s1779 = scalar_lea.vmem [#allocation4], %s1778
          %v1780 = vld [vmem:[%s1779] sm:$0x3]
          %s1781 = scalar_lea.vmem %s7, 384
          %v1782 = vld [vmem:[%s1781] sm:$0xff]
          %v1783 = vld [vmem:[%s1781 + $0x8] sm:$0xff]
          %v1784 = vld [vmem:[%s1781 + $0x10] sm:$0xff]
          %v1785 = vld [vmem:[%s1781 + $0x18] sm:$0xff]
          %v1786 = vld [vmem:[%s1781 + $0x20] sm:$0xff]
          %v1787 = vld [vmem:[%s1781 + $0x28] sm:$0xff]
          %v1788 = vld [vmem:[%s1781 + $0x30] sm:$0xff]
          %v1789 = vld [vmem:[%s1781 + $0x38] sm:$0xff]
          %v1791 = vsel %vm1585, %v1780, 0
          %1793 = vmatpush.msra.mxu0 0.0
          %1794 = vmatpush.msra.mxu0 0.0
          %1795 = vmatpush.msra.mxu0 0.0
          %1796 = vmatpush.msra.mxu0 0.0
          %1797 = vmatpush.msra.mxu0 0.0
          %1798 = vmatpush.msra.mxu0 0.0
          %1799 = vmatpush.msra.mxu0 0.0
          %1800 = vmatpush.msra.mxu0 0.0
          %1801 = vmatpush.msra.mxu0 %v1789
          %1802 = vmatpush.msra.mxu0 %v1788
          %1803 = vmatpush.msra.mxu0 %v1787
          %1804 = vmatpush.msra.mxu0 %v1786
          %1805 = vmatpush.msra.mxu0 %v1785
          %1806 = vmatpush.msra.mxu0 %v1784
          %1807 = vmatpush.msra.mxu0 %v1783
          %1808 = vmatpush.msra.mxu0 %v1782
          %1809 = vmatmul.f32.gmra.mxu0 %v1791
          %v1810 = vpop.f32.mrf.mxu0
          %v1811 = vadd.f32 0.0, %v1810
          %1812 = vdwg.mxu0
          %v1813 = vadd.f32 %v1776, %v1811
          %s1814 = sadd.s32 %s1778, 1
          %s1815 = scalar_lea.vmem [#allocation4], %s1814
          %v1816 = vld [vmem:[%s1815] sm:$0x3]
          %s1817 = scalar_lea.vmem %s7, 448
          %v1818 = vld [vmem:[%s1817] sm:$0xff]
          %v1819 = vld [vmem:[%s1817 + $0x8] sm:$0xff]
          %v1820 = vld [vmem:[%s1817 + $0x10] sm:$0xff]
          %v1821 = vld [vmem:[%s1817 + $0x18] sm:$0xff]
          %v1822 = vld [vmem:[%s1817 + $0x20] sm:$0xff]
          %v1823 = vld [vmem:[%s1817 + $0x28] sm:$0xff]
          %v1824 = vld [vmem:[%s1817 + $0x30] sm:$0xff]
          %v1825 = vld [vmem:[%s1817 + $0x38] sm:$0xff]
          %v1827 = vsel %vm1585, %v1816, 0
          %1829 = vmatpush.msra.mxu0 0.0
          %1830 = vmatpush.msra.mxu0 0.0
          %1831 = vmatpush.msra.mxu0 0.0
          %1832 = vmatpush.msra.mxu0 0.0
          %1833 = vmatpush.msra.mxu0 0.0
          %1834 = vmatpush.msra.mxu0 0.0
          %1835 = vmatpush.msra.mxu0 0.0
          %1836 = vmatpush.msra.mxu0 0.0
          %1837 = vmatpush.msra.mxu0 %v1825
          %1838 = vmatpush.msra.mxu0 %v1824
          %1839 = vmatpush.msra.mxu0 %v1823
          %1840 = vmatpush.msra.mxu0 %v1822
          %1841 = vmatpush.msra.mxu0 %v1821
          %1842 = vmatpush.msra.mxu0 %v1820
          %1843 = vmatpush.msra.mxu0 %v1819
          %1844 = vmatpush.msra.mxu0 %v1818
          %1845 = vmatmul.f32.gmra.mxu0 %v1827
          %v1846 = vpop.f32.mrf.mxu0
          %v1847 = vadd.f32 0.0, %v1846
          %1848 = vdwg.mxu0
          %v1849 = vadd.f32 %v1813, %v1847
          %s1850 = sadd.s32 %s1778, 2
          %s1851 = scalar_lea.vmem [#allocation4], %s1850
          %v1852 = vld [vmem:[%s1851] sm:$0x3]
          %s1853 = scalar_lea.vmem %s7, 512
          %v1854 = vld [vmem:[%s1853] sm:$0xff]
          %v1855 = vld [vmem:[%s1853 + $0x8] sm:$0xff]
          %v1856 = vld [vmem:[%s1853 + $0x10] sm:$0xff]
          %v1857 = vld [vmem:[%s1853 + $0x18] sm:$0xff]
          %v1858 = vld [vmem:[%s1853 + $0x20] sm:$0xff]
          %v1859 = vld [vmem:[%s1853 + $0x28] sm:$0xff]
          %v1860 = vld [vmem:[%s1853 + $0x30] sm:$0xff]
          %v1861 = vld [vmem:[%s1853 + $0x38] sm:$0xff]
          %v1863 = vsel %vm1585, %v1852, 0
          %1865 = vmatpush.msra.mxu0 0.0
          %1866 = vmatpush.msra.mxu0 0.0
          %1867 = vmatpush.msra.mxu0 0.0
          %1868 = vmatpush.msra.mxu0 0.0
          %1869 = vmatpush.msra.mxu0 0.0
          %1870 = vmatpush.msra.mxu0 0.0
          %1871 = vmatpush.msra.mxu0 0.0
          %1872 = vmatpush.msra.mxu0 0.0
          %1873 = vmatpush.msra.mxu0 %v1861
          %1874 = vmatpush.msra.mxu0 %v1860
          %1875 = vmatpush.msra.mxu0 %v1859
          %1876 = vmatpush.msra.mxu0 %v1858
          %1877 = vmatpush.msra.mxu0 %v1857
          %1878 = vmatpush.msra.mxu0 %v1856
          %1879 = vmatpush.msra.mxu0 %v1855
          %1880 = vmatpush.msra.mxu0 %v1854
          %1881 = vmatmul.f32.gmra.mxu0 %v1863
          %v1882 = vpop.f32.mrf.mxu0
          %v1883 = vadd.f32 0.0, %v1882
          %1884 = vdwg.mxu0
          %v1885 = vadd.f32 %v1849, %v1883
          %v1887 = vperm.slane %v334, 0
          %v1889 = vadd.f32 %v1885, %v1887
          %v1890 = vmax.f32 %v1889, 0.0
          %s1891 = smul.u32 %s1557, 2
          %s1892 = scalar_lea.vmem %s325, %s1891 [#allocation5]
          %vm1893 = vcmask 123904
          %1894 = vst.msk [vmem:[%s1892] sm:$0x3] %vm1893, %v1890
        $region82: #{encoder_forward.1} parent=55 // loop_footer
          %s1561 = sadd.s32 1, %s1557
        $region83: #{encoder_forward.1} parent=55 // loop_footer_branch
          %1556 = sbr.rel target = $region79
        $region84: #{encoder_forward.1} parent=55 // loop_exit
          _
        %s1895 = sand.u32 %s225, 1
        %s1896 = scalar_lea.sflag [#allocation6], %s1895
        %s1897 = sand.u32 %s225, 1
        %s1898 = smul.addr %s1897, 4
        %s1899 = scalar_lea.vmem [#allocation5], %s1898
        // Predicated region
        $region85: #{encoder_forward.1} parent=55 // pred_check
          %p1900 = pneg %p235
        $region86: #{encoder_forward.1} parent=55 // pred_check_branch
          %1902 = sbr.rel (%p1900) target = $region88
        $region87: #{encoder_forward.1} parent=55 // pred_region
          %1904 = vsyncadd %s1896, 0
          %s1905 = smul.addr %s23, 4
          %s1906 = scalar_lea.hbm %s9, %s1905
          %s1908 = sshll.u32 %s1899, 4
          %s1909 = int_to_ptr.vmem [resolvable:$true] %s1908
          %s1910 = sshll.u32 %s1906, 4
          %s1911 = int_to_ptr.hbm [resolvable:$true] %s1910
          %1913 = dma.vmem_to_hbm [thread:$0]  %s1909, 64, %s1911, %s1896
        $region88: #{encoder_forward.1} parent=55 // pred_fallthru
          _
      $region56: #{encoder_forward.1} parent=5 // pred_fallthru
        _
      %p1914 = scmp.le.s32.totalorder 2, %s18
      // Predicated region
      $region89: #{encoder_forward.1} parent=5 // pred_check
        %p1915 = pneg %p1914
      $region90: #{encoder_forward.1} parent=5 // pred_check_branch
        %1917 = sbr.rel (%p1915) target = $region92
      $region91: #{encoder_forward.1} parent=5 // pred_region
        %s1918 = ssub.s32 %s18, 2
        // Predicated region
        $region93: #{encoder_forward.1} parent=91 // pred_check
          %p1919 = pneg %p241
        $region94: #{encoder_forward.1} parent=91 // pred_check_branch
          %1921 = sbr.rel (%p1919) target = $region96
        $region95: #{encoder_forward.1} parent=91 // pred_region
          %s1922 = sand.u32 %s226, 1
          %s1923 = scalar_lea.sflag [#allocation6], %s1922
          %s1924 = sand.u32 %s226, 1
          %s1925 = smul.addr %s1924, 4
          %s1926 = scalar_lea.vmem [#allocation5], %s1925
          %1928 = dma.done %s1923, 64
        $region96: #{encoder_forward.1} parent=91 // pred_fallthru
          _
      $region92: #{encoder_forward.1} parent=5 // pred_fallthru
        _
    $region6: #{encoder_forward.1} parent=1 // loop_footer
      %s22 = sadd.s32 1, %s18
    $region7: #{encoder_forward.1} parent=1 // loop_footer_branch
      %17 = sbr.rel target = $region3
    $region8: #{encoder_forward.1} parent=1 // loop_exit
      _
    %1929 = vsyncpa [#allocation6], 1
    %s1930 = scalar_lea.sflag [#allocation6], 1
    %1931 = vsyncpa %s1930, 1

</llo_original>
